<compile_context>
chip_gen: v7x
topology: tpu7x:2x2x1
jax: 0.10.0
libtpu: 0.0.40
codegen_flags: <defaults>
</compile_context>

<pallas_src>
import functools

import jax
import jax.numpy as jnp
import numpy as np
from jax.experimental import pallas as pl
from jax.experimental.pallas import tpu as pltpu


# ---------------------------------------------------------------------------
# Static layout constants.
# ---------------------------------------------------------------------------
CTX_TYPES = ('people', 'season', 'sex', 'age', 'time')
CTX_SIZES = (5, 12, 5, 5, 4)
N_CTX = int(sum(CTX_SIZES))                      # 31 context nodes total
_CUM = np.cumsum((0,) + CTX_SIZES)
CTX_OFFSETS = {t: (int(_CUM[i]), int(_CUM[i + 1])) for i, t in enumerate(CTX_TYPES)}

HP = 128                                          # lane-padded hidden dim
GROUPS = 1 + len(CTX_TYPES)                       # spot + 5 context types


def _round_up(x, m):
    return ((x + m - 1) // m) * m


# ---------------------------------------------------------------------------
# Fused Pallas kernel: ALL ContextConv layers in one grid step.
# ---------------------------------------------------------------------------
def context_gnn_kernel(x0_ref,    # [N, Hp]        initial node slab (spot | ctx | pad)
                       a_ref,     # [N, N]         block anti-diagonal propagation op
                       mask_ref,  # [N, G*Hp]      per-group row selector (lane blocks)
                       w_ref,     # [L, G*Hp, Hp]  stacked per-group Linear weights
                       b_ref,     # [L, N, Hp]     per-row bias slab
                       out_ref,   # [N, Hp]        final node slab
                       *, num_layers, num_groups):
    f32 = jnp.float32
    x = x0_ref[...]
    a = a_ref[...]
    m = mask_ref[...]
    for l in range(num_layers):                    # static unroll, weights resident
        # One MXU dot for all 6 per-group Linears: row-masked lane-concat input.
        xb = jnp.concatenate([x] * num_groups, axis=1) * m        # [N, G*Hp]
        h = jnp.dot(xb, w_ref[l], preferred_element_type=f32) + b_ref[l]
        # One MXU dot for both propagation directions (ctx->spot mean folded
        # into A's top-right block; spot->ctx in the bottom-left block) + ReLU.
        x = jnp.maximum(jnp.dot(a, h, preferred_element_type=f32), 0.0)
    out_ref[...] = x


def context_gnn_fused(packed, *, num_layers, n_spot, hidden):
    """Runs the whole ContextGNN forward in a single pallas_call (no layer grid)."""
    x0, a, mask, w, b = packed['x0'], packed['a'], packed['mask'], packed['w'], packed['b']
    n_pad = x0.shape[0]
    gh = mask.shape[1]

    kernel = functools.partial(context_gnn_kernel,
                               num_layers=num_layers, num_groups=GROUPS)

    flops = int(num_layers * (2 * n_pad * gh * HP + 2 * n_pad * n_pad * HP))
    bytes_accessed = int(sum(int(np.prod(v.shape)) * v.dtype.itemsize
                             for v in (x0, a, mask, w, b)) + n_pad * HP * 4)
    # VMEM budget derived from the resident set (with headroom for the
    # concatenated intermediate and double-buffering); capped below v7x's 64 MiB.
    vmem_limit = int(min(48 * 1024 * 1024,
                         max(16 * 1024 * 1024, 6 * bytes_accessed)))

    out = pl.pallas_call(
        kernel,
        out_shape=jax.ShapeDtypeStruct((n_pad, HP), jnp.float32),
        grid=(1,),
        in_specs=[
            pl.BlockSpec((n_pad, HP), lambda i: (0, 0)),                 # x0
            pl.BlockSpec((n_pad, n_pad), lambda i: (0, 0)),              # A
            pl.BlockSpec((n_pad, gh), lambda i: (0, 0)),                 # mask
            pl.BlockSpec((num_layers, gh, HP), lambda i: (0, 0, 0)),     # W stack
            pl.BlockSpec((num_layers, n_pad, HP), lambda i: (0, 0, 0)),  # bias slab
        ],
        out_specs=pl.BlockSpec((n_pad, HP), lambda i: (0, 0)),
        compiler_params=pltpu.CompilerParams(
            dimension_semantics=("arbitrary",),
            vmem_limit_bytes=vmem_limit,
        ),
        cost_estimate=pl.CostEstimate(
            flops=flops, transcendentals=0, bytes_accessed=bytes_accessed),
    )(x0, a, mask, w, b)

    result = {'spot': out[:n_spot, :hidden]}
    for t in CTX_TYPES:
        lo, hi = CTX_OFFSETS[t]
        result[t] = out[n_spot + lo:n_spot + hi, :hidden]
    return result


# ---------------------------------------------------------------------------
# Host-side packing into the fused, lane-dense layout.
# ---------------------------------------------------------------------------
def pack_fused(spot0, embeddings, contexts, layer_params, n_spot, hidden):
    n_pad = _round_up(n_spot + N_CTX, 128)
    gh = GROUPS * HP
    L = len(layer_params)

    # Initial node slab: rows [0,Ns) spot, rows [Ns, Ns+31) contexts, rest zero.
    x0 = np.zeros((n_pad, HP), np.float32)
    x0[:n_spot, :hidden] = np.asarray(spot0)
    for t in CTX_TYPES:
        lo, hi = CTX_OFFSETS[t]
        x0[n_spot + lo:n_spot + hi, :hidden] = np.asarray(embeddings[t])

    # Block anti-diagonal propagation operator (mean folded as *0.2).
    a = np.zeros((n_pad, n_pad), np.float32)
    for t in CTX_TYPES:
        lo, hi = CTX_OFFSETS[t]
        a[:n_spot, n_spot + lo:n_spot + hi] = 0.2 * np.asarray(contexts[t])
        a[n_spot + lo:n_spot + hi, :n_spot] = np.asarray(contexts[f'{t}_T'])

    # Row-group selector: group g owns lane block [g*Hp, (g+1)*Hp).
    mask = np.zeros((n_pad, gh), np.float32)
    mask[:n_spot, 0:HP] = 1.0
    for g, t in enumerate(CTX_TYPES, start=1):
        lo, hi = CTX_OFFSETS[t]
        mask[n_spot + lo:n_spot + hi, g * HP:(g + 1) * HP] = 1.0

    # Stacked per-layer weights [L, G*Hp, Hp] and per-row bias slabs [L, N, Hp].
    names = ('spot',) + CTX_TYPES
    w = np.zeros((L, gh, HP), np.float32)
    b = np.zeros((L, n_pad, HP), np.float32)
    for l, p in enumerate(layer_params):
        for g, name in enumerate(names):
            w[l, g * HP:g * HP + hidden, :hidden] = np.asarray(p[f'{name}_w'])
        b[l, :n_spot, :hidden] = np.asarray(p['spot_b'])
        for t in CTX_TYPES:
            lo, hi = CTX_OFFSETS[t]
            b[l, n_spot + lo:n_spot + hi, :hidden] = np.asarray(p[f'{t}_b'])

    return dict(x0=jnp.asarray(x0), a=jnp.asarray(a), mask=jnp.asarray(mask),
                w=jnp.asarray(w), b=jnp.asarray(b))


# ---------------------------------------------------------------------------
# Pure-JAX reference (unfused, mirrors the PyTorch module op-for-op).
# ---------------------------------------------------------------------------
def _conv_ref(x, p, c):
    def lin(v, w, b):
        return v @ w + b
    spot_h = lin(x['spot'], p['spot_w'], p['spot_b'])
    people_h = lin(x['people'], p['people_w'], p['people_b'])
    season_h = lin(x['season'], p['season_w'], p['season_b'])
    sex_h = lin(x['sex'], p['sex_w'], p['sex_b'])
    age_h = lin(x['age'], p['age_w'], p['age_b'])
    time_h = lin(x['time'], p['time_w'], p['time_b'])

    spot_out = (c['people'] @ people_h + c['season'] @ season_h + c['sex'] @ sex_h
                + c['age'] @ age_h + c['time'] @ time_h) / 5.0
    out = {
        'spot': spot_out,
        'people': c['people_T'] @ spot_h,
        'sex': c['sex_T'] @ spot_h,
        'time': c['time_T'] @ spot_h,
        'age': c['age_T'] @ spot_h,
        'season': c['season_T'] @ spot_h,
    }
    return {k: jnp.maximum(v, 0.0) for k, v in out.items()}


def _gnn_ref(x_dict, embeddings, layer_params, contexts):
    x = dict(x_dict)
    x['season'] = embeddings['season']
    x['sex'] = embeddings['sex']
    x['time'] = embeddings['time']
    x['age'] = embeddings['age']
    x['people'] = embeddings['people']
    for p in layer_params:
        x = _conv_ref(x, p, contexts)
    return x


# ---------------------------------------------------------------------------
# Deterministic parameter / input construction.
# ---------------------------------------------------------------------------
def _normalize(m):
    return m / jnp.sum(m, axis=1, keepdims=True)


def build_everything(key, n_spot, hidden, num_layers):
    n_people, n_season, n_sex, n_age, n_time = CTX_SIZES
    keys = jax.random.split(key, 32)
    ki = iter(range(32))

    embeddings = {
        'people': 0.1 * jax.random.normal(keys[next(ki)], (n_people, hidden), jnp.float32),
        'season': 0.1 * jax.random.normal(keys[next(ki)], (n_season, hidden), jnp.float32),
        'sex':    0.1 * jax.random.normal(keys[next(ki)], (n_sex, hidden), jnp.float32),
        'age':    0.1 * jax.random.normal(keys[next(ki)], (n_age, hidden), jnp.float32),
        'time':   0.1 * jax.random.normal(keys[next(ki)], (n_time, hidden), jnp.float32),
    }

    raw = {
        'people': jax.random.uniform(keys[next(ki)], (n_spot, n_people), jnp.float32),
        'season': jax.random.uniform(keys[next(ki)], (n_spot, n_season), jnp.float32),
        'sex':    jax.random.uniform(keys[next(ki)], (n_spot, n_sex), jnp.float32),
        'age':    jax.random.uniform(keys[next(ki)], (n_spot, n_age), jnp.float32),
        'time':   jax.random.uniform(keys[next(ki)], (n_spot, n_time), jnp.float32),
    }
    contexts = {
        'people': _normalize(raw['people']),
        'season': _normalize(raw['season']),
        'sex':    _normalize(raw['sex'] + 1e-6),
        'age':    _normalize(raw['age']),
        'time':   _normalize(raw['time']),
        'people_T': _normalize(raw['people'].T),
        'season_T': _normalize(raw['season'].T),
        'sex_T':    _normalize(raw['sex'].T + 1e-6),
        'age_T':    _normalize(raw['age'].T),
        'time_T':   _normalize(raw['time'].T),
    }

    bound = 1.0 / np.sqrt(hidden)
    layer_params = []
    names = ['spot', 'people', 'season', 'sex', 'age', 'time']
    for _ in range(num_layers):
        lkey = keys[next(ki)]
        lks = jax.random.split(lkey, 12)
        p = {}
        for j, name in enumerate(names):
            p[f'{name}_w'] = jax.random.uniform(
                lks[2 * j], (hidden, hidden), jnp.float32, -bound, bound)
            p[f'{name}_b'] = jax.random.uniform(
                lks[2 * j + 1], (1, hidden), jnp.float32, -bound, bound)
        layer_params.append(p)

    return embeddings, contexts, layer_params


if __name__ == "__main__":
    key = jax.random.PRNGKey(0)
    n_spot, hidden, num_layers = 64, 32, 2

    k_in, k_params = jax.random.split(key)
    embeddings, contexts, layer_params = build_everything(
        k_params, n_spot, hidden, num_layers)

    # input x_dict: only 'spot' features come from the caller
    spot0 = 0.1 * jax.random.normal(k_in, (n_spot, hidden), jnp.float32)

    packed = pack_fused(spot0, embeddings, contexts, layer_params, n_spot, hidden)
    out = context_gnn_fused(packed, num_layers=num_layers,
                            n_spot=n_spot, hidden=hidden)
    out = jax.tree_util.tree_map(jax.block_until_ready, out)

    # sanity-check against an unfused pure-JAX reference
    x_dict = {'spot': spot0, 'people': None, 'season': None,
              'sex': None, 'age': None, 'time': None}
    ref = _gnn_ref(x_dict, embeddings, layer_params, contexts)
    for k in ['spot', 'people', 'sex', 'time', 'age', 'season']:
        np.testing.assert_allclose(np.asarray(out[k]), np.asarray(ref[k]),
                                   rtol=2e-2, atol=2e-3)

    print("KERNEL_OK")
</pallas_src>

<mosaic_0001>
module attributes {stable_mosaic.version = 11 : i64} {
  func.func @context_gnn_kernel(%arg0: i32, %arg1: memref<128x128xf32, #tpu.memory_space<vmem>>, %arg2: memref<128x128xf32, #tpu.memory_space<vmem>>, %arg3: memref<128x768xf32, #tpu.memory_space<vmem>>, %arg4: memref<2x768x128xf32, #tpu.memory_space<vmem>>, %arg5: memref<2x128x128xf32, #tpu.memory_space<vmem>>, %arg6: memref<128x128xf32, #tpu.memory_space<vmem>>) attributes {dimension_semantics = [#tpu.dimension_semantics<arbitrary>], iteration_bounds = array<i64: 1>, scalar_prefetch = 0 : i64, scratch_operands = 0 : i64, tpu.core_type = #tpu.core_type<tc>, window_params = [{pipeline_mode = #tpu.pipeline_mode<synchronous>, transform_indices = @transform_0, window_bounds = array<i64: 128, 128>}, {pipeline_mode = #tpu.pipeline_mode<synchronous>, transform_indices = @transform_1, window_bounds = array<i64: 128, 128>}, {pipeline_mode = #tpu.pipeline_mode<synchronous>, transform_indices = @transform_2, window_bounds = array<i64: 128, 768>}, {pipeline_mode = #tpu.pipeline_mode<synchronous>, transform_indices = @transform_3, window_bounds = array<i64: 2, 768, 128>}, {pipeline_mode = #tpu.pipeline_mode<synchronous>, transform_indices = @transform_4, window_bounds = array<i64: 2, 128, 128>}, {pipeline_mode = #tpu.pipeline_mode<synchronous>, transform_indices = @transform_5, window_bounds = array<i64: 128, 128>}]} {
    %c0 = arith.constant 0 : index
    %c0_0 = arith.constant 0 : index
    %0 = vector.load %arg1[%c0, %c0_0] : memref<128x128xf32, #tpu.memory_space<vmem>>, vector<128x128xf32>
    %c0_1 = arith.constant 0 : index
    %c0_2 = arith.constant 0 : index
    %1 = vector.load %arg2[%c0_1, %c0_2] : memref<128x128xf32, #tpu.memory_space<vmem>>, vector<128x128xf32>
    %c0_3 = arith.constant 0 : index
    %c0_4 = arith.constant 0 : index
    %2 = vector.load %arg3[%c0_3, %c0_4] : memref<128x768xf32, #tpu.memory_space<vmem>>, vector<128x768xf32>
    %3 = tpu.concatenate %0, %0, %0, %0, %0, %0 in 1 : vector<128x128xf32>, vector<128x128xf32>, vector<128x128xf32>, vector<128x128xf32>, vector<128x128xf32>, vector<128x128xf32> -> vector<128x768xf32>
    %4 = arith.mulf %3, %2 : vector<128x768xf32>
    %c0_5 = arith.constant 0 : index
    %c0_6 = arith.constant 0 : index
    %c0_7 = arith.constant 0 : index
    %5 = vector.load %arg4[%c0_5, %c0_6, %c0_7] : memref<2x768x128xf32, #tpu.memory_space<vmem>>, vector<1x768x128xf32>
    %6 = vector.shape_cast %5 : vector<1x768x128xf32> to vector<768x128xf32>
    %cst = arith.constant dense<0.000000e+00> : vector<128x128xf32>
    %7 = tpu.matmul %4, %6, %cst {dimension_numbers = #tpu.dot_dimension_numbers<[1], [0], [0], [1], [0, 0, 1, 1], [], []>} : vector<128x768xf32>, vector<768x128xf32>, vector<128x128xf32> -> vector<128x128xf32>
    %c0_8 = arith.constant 0 : index
    %c0_9 = arith.constant 0 : index
    %c0_10 = arith.constant 0 : index
    %8 = vector.load %arg5[%c0_8, %c0_9, %c0_10] : memref<2x128x128xf32, #tpu.memory_space<vmem>>, vector<1x128x128xf32>
    %9 = vector.shape_cast %8 : vector<1x128x128xf32> to vector<128x128xf32>
    %10 = arith.addf %7, %9 : vector<128x128xf32>
    %cst_11 = arith.constant dense<0.000000e+00> : vector<128x128xf32>
    %11 = tpu.matmul %1, %10, %cst_11 {dimension_numbers = #tpu.dot_dimension_numbers<[1], [0], [0], [1], [0, 0, 1, 1], [], []>} : vector<128x128xf32>, vector<128x128xf32>, vector<128x128xf32> -> vector<128x128xf32>
    %cst_12 = arith.constant 0.000000e+00 : f32
    %12 = vector.broadcast %cst_12 : f32 to vector<128x128xf32>
    %13 = arith.maximumf %11, %12 : vector<128x128xf32>
    %14 = tpu.concatenate %13, %13, %13, %13, %13, %13 in 1 : vector<128x128xf32>, vector<128x128xf32>, vector<128x128xf32>, vector<128x128xf32>, vector<128x128xf32>, vector<128x128xf32> -> vector<128x768xf32>
    %15 = arith.mulf %14, %2 : vector<128x768xf32>
    %c1 = arith.constant 1 : index
    %c0_13 = arith.constant 0 : index
    %c0_14 = arith.constant 0 : index
    %16 = vector.load %arg4[%c1, %c0_13, %c0_14] : memref<2x768x128xf32, #tpu.memory_space<vmem>>, vector<1x768x128xf32>
    %17 = vector.shape_cast %16 : vector<1x768x128xf32> to vector<768x128xf32>
    %cst_15 = arith.constant dense<0.000000e+00> : vector<128x128xf32>
    %18 = tpu.matmul %15, %17, %cst_15 {dimension_numbers = #tpu.dot_dimension_numbers<[1], [0], [0], [1], [0, 0, 1, 1], [], []>} : vector<128x768xf32>, vector<768x128xf32>, vector<128x128xf32> -> vector<128x128xf32>
    %c1_16 = arith.constant 1 : index
    %c0_17 = arith.constant 0 : index
    %c0_18 = arith.constant 0 : index
    %19 = vector.load %arg5[%c1_16, %c0_17, %c0_18] : memref<2x128x128xf32, #tpu.memory_space<vmem>>, vector<1x128x128xf32>
    %20 = vector.shape_cast %19 : vector<1x128x128xf32> to vector<128x128xf32>
    %21 = arith.addf %18, %20 : vector<128x128xf32>
    %cst_19 = arith.constant dense<0.000000e+00> : vector<128x128xf32>
    %22 = tpu.matmul %1, %21, %cst_19 {dimension_numbers = #tpu.dot_dimension_numbers<[1], [0], [0], [1], [0, 0, 1, 1], [], []>} : vector<128x128xf32>, vector<128x128xf32>, vector<128x128xf32> -> vector<128x128xf32>
    %cst_20 = arith.constant 0.000000e+00 : f32
    %23 = vector.broadcast %cst_20 : f32 to vector<128x128xf32>
    %24 = arith.maximumf %22, %23 : vector<128x128xf32>
    %c0_21 = arith.constant 0 : index
    %c0_22 = arith.constant 0 : index
    %25 = vector.load %arg6[%c0_21, %c0_22] : memref<128x128xf32, #tpu.memory_space<vmem>>, vector<128x128xf32>
    tpu.vector_store %arg6[%c0_21, %c0_22], %24 {strides = array<i32>} : memref<128x128xf32, #tpu.memory_space<vmem>>, vector<128x128xf32>,
    return
  }
  func.func @transform_0(%arg0: i32) -> (i32, i32) {
    %c0_i32 = arith.constant 0 : i32
    %c0_i32_0 = arith.constant 0 : i32
    %c0_i32_1 = arith.constant 0 : i32
    return %c0_i32, %c0_i32_0 : i32, i32
  }
  func.func @transform_1(%arg0: i32) -> (i32, i32) {
    %c0_i32 = arith.constant 0 : i32
    %c0_i32_0 = arith.constant 0 : i32
    %c0_i32_1 = arith.constant 0 : i32
    return %c0_i32, %c0_i32_0 : i32, i32
  }
  func.func @transform_2(%arg0: i32) -> (i32, i32) {
    %c0_i32 = arith.constant 0 : i32
    %c0_i32_0 = arith.constant 0 : i32
    %c0_i32_1 = arith.constant 0 : i32
    return %c0_i32, %c0_i32_0 : i32, i32
  }
  func.func @transform_3(%arg0: i32) -> (i32, i32, i32) {
    %c0_i32 = arith.constant 0 : i32
    %c0_i32_0 = arith.constant 0 : i32
    %c0_i32_1 = arith.constant 0 : i32
    %c0_i32_2 = arith.constant 0 : i32
    return %c0_i32, %c0_i32_0, %c0_i32_1 : i32, i32, i32
  }
  func.func @transform_4(%arg0: i32) -> (i32, i32, i32) {
    %c0_i32 = arith.constant 0 : i32
    %c0_i32_0 = arith.constant 0 : i32
    %c0_i32_1 = arith.constant 0 : i32
    %c0_i32_2 = arith.constant 0 : i32
    return %c0_i32, %c0_i32_0, %c0_i32_1 : i32, i32, i32
  }
  func.func @transform_5(%arg0: i32) -> (i32, i32) {
    %c0_i32 = arith.constant 0 : i32
    %c0_i32_0 = arith.constant 0 : i32
    %c0_i32_1 = arith.constant 0 : i32
    return %c0_i32, %c0_i32_0 : i32, i32
  }
}

</mosaic_0001>

<llo_original>
// kernel: tpu_custom_call.1
$region0: #{tpu_custom_call.1}
  #allocation0 [shape = 'u32[]', space=smem, size = 0x4, offset = 0x4, fixed_abs, tag = 'smem constant byte address 0x4 - core index']
  #allocation1 [shape = 'u32[144,128]{1,0:T(1,128)}', space=vmem, size = 0x12000, scoped, tag = 'internal scratch']
  %s0 = inlined_call_operand.hbm [shape: f32[128,128], index: 0, kind: input, shape index: {}]
  %s1 = inlined_call_operand.hbm [shape: f32[128,128], index: 1, kind: input, shape index: {}]
  %s2 = inlined_call_operand.hbm [shape: f32[128,768], index: 2, kind: input, shape index: {}]
  %s3 = inlined_call_operand.hbm [shape: f32[2,768,128], index: 3, kind: input, shape index: {}]
  %s4 = inlined_call_operand.hbm [shape: f32[2,128,128], index: 4, kind: input, shape index: {}]
  %s5 = inlined_call_operand.hbm [shape: f32[128,128], index: 5, kind: output, shape index: {}]
  %s6 = sld [smem:[#allocation0]]
  $region50: #{tpu_custom_call.1} parent=0
    _
  %s8 = ssub.s32 1, %s6
  %s9 = scalar_select 0, %s8, %s6
  $region1: #{tpu_custom_call.1} parent=0
    #allocation2 [shape = 'u8[65536]{0}', space=vmem, size = 0x10000, scoped, tag = 'input window, operand 0, single buffered']
    #allocation3 [shape = 's32[1]{0}', space=sflag, size = 0x4, scoped, tag = 'scoped memory for tpu_custom_call.1']
    #allocation4 [shape = 's32[1]{0}', space=sflag, size = 0x4, scoped, tag = 'scoped memory for tpu_custom_call.1']
    #allocation5 [shape = 'u8[65536]{0}', space=vmem, size = 0x10000, scoped, tag = 'input window, operand 1, single buffered']
    #allocation6 [shape = 's32[1]{0}', space=sflag, size = 0x4, scoped, tag = 'scoped memory for tpu_custom_call.1']
    #allocation7 [shape = 'u8[393216]{0}', space=vmem, size = 0x60000, scoped, tag = 'input window, operand 2, single buffered']
    #allocation8 [shape = 'u8[786432]{0}', space=vmem, size = 0xc0000, scoped, tag = 'input window, operand 3, single buffered']
    #allocation9 [shape = 's32[1]{0}', space=sflag, size = 0x4, scoped, tag = 'scoped memory for tpu_custom_call.1']
    #allocation10 [shape = 'u8[131072]{0}', space=vmem, size = 0x20000, scoped, tag = 'input window, operand 4, single buffered']
    #allocation11 [shape = 'u8[65536]{0}', space=vmem, size = 0x10000, scoped, tag = 'output window, operand 0, single buffered']
    %10 = vsyncpa [#allocation3], 0
    %11 = vsyncpa [#allocation6], 0
    %12 = vsyncpa [#allocation9], 0
    %13 = vsyncpa [#allocation4], 0
    // Predicated region
    $region2: #{tpu_custom_call.1} parent=1 // pred_check
      _
    $region3: #{tpu_custom_call.1} parent=1 // pred_check_branch
      %15 = sbr.rel (0) target = $region5
    $region4: #{tpu_custom_call.1} parent=1 // pred_region
      %s17 = ssub.s32 2048, 2048
      %18 = vsyncadd [#allocation3], %s17
      %s19 = sshll.u32 [#allocation2], 4
      %s20 = int_to_ptr.vmem [resolvable:$true] %s19
      %25 = dma.hbm_to_vmem [thread:$0]  %s0, 2048, %s20, [#allocation3], 128, 128, 8
    $region5: #{tpu_custom_call.1} parent=1 // pred_fallthru
      _
    // Predicated region
    $region6: #{tpu_custom_call.1} parent=1 // pred_check
      _
    $region7: #{tpu_custom_call.1} parent=1 // pred_check_branch
      %27 = sbr.rel (0) target = $region9
    $region8: #{tpu_custom_call.1} parent=1 // pred_region
      %s29 = ssub.s32 2048, 2048
      %30 = vsyncadd [#allocation6], %s29
      %s31 = sshll.u32 [#allocation5], 4
      %s32 = int_to_ptr.vmem [resolvable:$true] %s31
      %37 = dma.hbm_to_vmem [thread:$0]  %s1, 2048, %s32, [#allocation6], 128, 128, 8
    $region9: #{tpu_custom_call.1} parent=1 // pred_fallthru
      _
    // Predicated region
    $region10: #{tpu_custom_call.1} parent=1 // pred_check
      _
    $region11: #{tpu_custom_call.1} parent=1 // pred_check_branch
      %39 = sbr.rel (0) target = $region13
    $region12: #{tpu_custom_call.1} parent=1 // pred_region
      %s41 = ssub.s32 12288, 12288
      %42 = vsyncadd [#allocation6], %s41
      %s43 = sshll.u32 [#allocation7], 4
      %s44 = int_to_ptr.vmem [resolvable:$true] %s43
      %49 = dma.hbm_to_vmem [thread:$0]  %s2, 12288, %s44, [#allocation6], 768, 768, 48
    $region13: #{tpu_custom_call.1} parent=1 // pred_fallthru
      _
    // Predicated region
    $region14: #{tpu_custom_call.1} parent=1 // pred_check
      _
    $region15: #{tpu_custom_call.1} parent=1 // pred_check_branch
      %51 = sbr.rel (0) target = $region17
    $region16: #{tpu_custom_call.1} parent=1 // pred_region
      %s53 = ssub.s32 24576, 24576
      %54 = vsyncadd [#allocation9], %s53
      %s55 = sshll.u32 [#allocation8], 4
      %s56 = int_to_ptr.vmem [resolvable:$true] %s55
      %61 = dma.hbm_to_vmem [thread:$0]  %s3, 24576, %s56, [#allocation9], 128, 128, 8
    $region17: #{tpu_custom_call.1} parent=1 // pred_fallthru
      _
    // Predicated region
    $region18: #{tpu_custom_call.1} parent=1 // pred_check
      _
    $region19: #{tpu_custom_call.1} parent=1 // pred_check_branch
      %63 = sbr.rel (0) target = $region21
    $region20: #{tpu_custom_call.1} parent=1 // pred_region
      %s65 = ssub.s32 4096, 4096
      %66 = vsyncadd [#allocation9], %s65
      %s67 = sshll.u32 [#allocation10], 4
      %s68 = int_to_ptr.vmem [resolvable:$true] %s67
      %73 = dma.hbm_to_vmem [thread:$0]  %s4, 4096, %s68, [#allocation9], 128, 128, 8
    $region21: #{tpu_custom_call.1} parent=1 // pred_fallthru
      _
    // Predicated region
    $region22: #{tpu_custom_call.1} parent=1 // pred_check
      _
    $region23: #{tpu_custom_call.1} parent=1 // pred_check_branch
      %75 = sbr.rel (0) target = $region25
    $region24: #{tpu_custom_call.1} parent=1 // pred_region
      %76 = dma.done [#allocation3], 2048
    $region25: #{tpu_custom_call.1} parent=1 // pred_fallthru
      _
    // Predicated region
    $region26: #{tpu_custom_call.1} parent=1 // pred_check
      _
    $region27: #{tpu_custom_call.1} parent=1 // pred_check_branch
      %78 = sbr.rel (0) target = $region29
    $region28: #{tpu_custom_call.1} parent=1 // pred_region
      %79 = dma.done [#allocation6], 2048
    $region29: #{tpu_custom_call.1} parent=1 // pred_fallthru
      _
    // Predicated region
    $region30: #{tpu_custom_call.1} parent=1 // pred_check
      _
    $region31: #{tpu_custom_call.1} parent=1 // pred_check_branch
      %81 = sbr.rel (0) target = $region33
    $region32: #{tpu_custom_call.1} parent=1 // pred_region
      %82 = dma.done [#allocation6], 12288
    $region33: #{tpu_custom_call.1} parent=1 // pred_fallthru
      _
    // Predicated region
    $region34: #{tpu_custom_call.1} parent=1 // pred_check
      _
    $region35: #{tpu_custom_call.1} parent=1 // pred_check_branch
      %84 = sbr.rel (0) target = $region37
    $region36: #{tpu_custom_call.1} parent=1 // pred_region
      %85 = dma.done [#allocation9], 24576
    $region37: #{tpu_custom_call.1} parent=1 // pred_fallthru
      _
    // Predicated region
    $region38: #{tpu_custom_call.1} parent=1 // pred_check
      _
    $region39: #{tpu_custom_call.1} parent=1 // pred_check_branch
      %87 = sbr.rel (0) target = $region41
    $region40: #{tpu_custom_call.1} parent=1 // pred_region
      %88 = dma.done [#allocation9], 4096
    $region41: #{tpu_custom_call.1} parent=1 // pred_fallthru
      _
    %v89 = vld [vmem:[#allocation2] sm:$0xff]
    %v90 = vld [vmem:[#allocation2 + $0x8] sm:$0xff]
    %v91 = vld [vmem:[#allocation2 + $0x10] sm:$0xff]
    %v92 = vld [vmem:[#allocation2 + $0x18] sm:$0xff]
    %v93 = vld [vmem:[#allocation2 + $0x20] sm:$0xff]
    %v94 = vld [vmem:[#allocation2 + $0x28] sm:$0xff]
    %v95 = vld [vmem:[#allocation2 + $0x30] sm:$0xff]
    %v96 = vld [vmem:[#allocation2 + $0x38] sm:$0xff]
    %v97 = vld [vmem:[#allocation2 + $0x40] sm:$0xff]
    %v98 = vld [vmem:[#allocation2 + $0x48] sm:$0xff]
    %v99 = vld [vmem:[#allocation2 + $0x50] sm:$0xff]
    %v100 = vld [vmem:[#allocation2 + $0x58] sm:$0xff]
    %v101 = vld [vmem:[#allocation2 + $0x60] sm:$0xff]
    %v102 = vld [vmem:[#allocation2 + $0x68] sm:$0xff]
    %v103 = vld [vmem:[#allocation2 + $0x70] sm:$0xff]
    %v104 = vld [vmem:[#allocation2 + $0x78] sm:$0xff]
    %v105 = vld [vmem:[#allocation5] sm:$0xff]
    %v106 = vld [vmem:[#allocation5 + $0x8] sm:$0xff]
    %v107 = vld [vmem:[#allocation5 + $0x10] sm:$0xff]
    %v108 = vld [vmem:[#allocation5 + $0x18] sm:$0xff]
    %v109 = vld [vmem:[#allocation5 + $0x20] sm:$0xff]
    %v110 = vld [vmem:[#allocation5 + $0x28] sm:$0xff]
    %v111 = vld [vmem:[#allocation5 + $0x30] sm:$0xff]
    %v112 = vld [vmem:[#allocation5 + $0x38] sm:$0xff]
    %v113 = vld [vmem:[#allocation5 + $0x40] sm:$0xff]
    %v114 = vld [vmem:[#allocation5 + $0x48] sm:$0xff]
    %v115 = vld [vmem:[#allocation5 + $0x50] sm:$0xff]
    %v116 = vld [vmem:[#allocation5 + $0x58] sm:$0xff]
    %v117 = vld [vmem:[#allocation5 + $0x60] sm:$0xff]
    %v118 = vld [vmem:[#allocation5 + $0x68] sm:$0xff]
    %v119 = vld [vmem:[#allocation5 + $0x70] sm:$0xff]
    %v120 = vld [vmem:[#allocation5 + $0x78] sm:$0xff]
    %v121 = vld [vmem:[#allocation7] sm:$0xff]
    %v122 = vld [vmem:[#allocation7 + $0x8] sm:$0xff]
    %v123 = vld [vmem:[#allocation7 + $0x10] sm:$0xff]
    %v124 = vld [vmem:[#allocation7 + $0x18] sm:$0xff]
    %v125 = vld [vmem:[#allocation7 + $0x20] sm:$0xff]
    %v126 = vld [vmem:[#allocation7 + $0x28] sm:$0xff]
    %v127 = vld [vmem:[#allocation7 + $0x30] sm:$0xff]
    %v128 = vld [vmem:[#allocation7 + $0x38] sm:$0xff]
    %v129 = vld [vmem:[#allocation7 + $0x40] sm:$0xff]
    %v130 = vld [vmem:[#allocation7 + $0x48] sm:$0xff]
    %v131 = vld [vmem:[#allocation7 + $0x50] sm:$0xff]
    %v132 = vld [vmem:[#allocation7 + $0x58] sm:$0xff]
    %v133 = vld [vmem:[#allocation7 + $0x60] sm:$0xff]
    %v134 = vld [vmem:[#allocation7 + $0x68] sm:$0xff]
    %v135 = vld [vmem:[#allocation7 + $0x70] sm:$0xff]
    %v136 = vld [vmem:[#allocation7 + $0x78] sm:$0xff]
    %v137 = vld [vmem:[#allocation7 + $0x80] sm:$0xff]
    %v138 = vld [vmem:[#allocation7 + $0x88] sm:$0xff]
    %v139 = vld [vmem:[#allocation7 + $0x90] sm:$0xff]
    %v140 = vld [vmem:[#allocation7 + $0x98] sm:$0xff]
    %v141 = vld [vmem:[#allocation7 + $0xa0] sm:$0xff]
    %v142 = vld [vmem:[#allocation7 + $0xa8] sm:$0xff]
    %v143 = vld [vmem:[#allocation7 + $0xb0] sm:$0xff]
    %v144 = vld [vmem:[#allocation7 + $0xb8] sm:$0xff]
    %v145 = vld [vmem:[#allocation7 + $0xc0] sm:$0xff]
    %v146 = vld [vmem:[#allocation7 + $0xc8] sm:$0xff]
    %v147 = vld [vmem:[#allocation7 + $0xd0] sm:$0xff]
    %v148 = vld [vmem:[#allocation7 + $0xd8] sm:$0xff]
    %v149 = vld [vmem:[#allocation7 + $0xe0] sm:$0xff]
    %v150 = vld [vmem:[#allocation7 + $0xe8] sm:$0xff]
    %v151 = vld [vmem:[#allocation7 + $0xf0] sm:$0xff]
    %v152 = vld [vmem:[#allocation7 + $0xf8] sm:$0xff]
    %v153 = vld [vmem:[#allocation7 + $0x100] sm:$0xff]
    %v154 = vld [vmem:[#allocation7 + $0x108] sm:$0xff]
    %v155 = vld [vmem:[#allocation7 + $0x110] sm:$0xff]
    %v156 = vld [vmem:[#allocation7 + $0x118] sm:$0xff]
    %v157 = vld [vmem:[#allocation7 + $0x120] sm:$0xff]
    %v158 = vld [vmem:[#allocation7 + $0x128] sm:$0xff]
    %v159 = vld [vmem:[#allocation7 + $0x130] sm:$0xff]
    %v160 = vld [vmem:[#allocation7 + $0x138] sm:$0xff]
    %v161 = vld [vmem:[#allocation7 + $0x140] sm:$0xff]
    %v162 = vld [vmem:[#allocation7 + $0x148] sm:$0xff]
    %v163 = vld [vmem:[#allocation7 + $0x150] sm:$0xff]
    %v164 = vld [vmem:[#allocation7 + $0x158] sm:$0xff]
    %v165 = vld [vmem:[#allocation7 + $0x160] sm:$0xff]
    %v166 = vld [vmem:[#allocation7 + $0x168] sm:$0xff]
    %v167 = vld [vmem:[#allocation7 + $0x170] sm:$0xff]
    %v168 = vld [vmem:[#allocation7 + $0x178] sm:$0xff]
    %v169 = vld [vmem:[#allocation7 + $0x180] sm:$0xff]
    %v170 = vld [vmem:[#allocation7 + $0x188] sm:$0xff]
    %v171 = vld [vmem:[#allocation7 + $0x190] sm:$0xff]
    %v172 = vld [vmem:[#allocation7 + $0x198] sm:$0xff]
    %v173 = vld [vmem:[#allocation7 + $0x1a0] sm:$0xff]
    %v174 = vld [vmem:[#allocation7 + $0x1a8] sm:$0xff]
    %v175 = vld [vmem:[#allocation7 + $0x1b0] sm:$0xff]
    %v176 = vld [vmem:[#allocation7 + $0x1b8] sm:$0xff]
    %v177 = vld [vmem:[#allocation7 + $0x1c0] sm:$0xff]
    %v178 = vld [vmem:[#allocation7 + $0x1c8] sm:$0xff]
    %v179 = vld [vmem:[#allocation7 + $0x1d0] sm:$0xff]
    %v180 = vld [vmem:[#allocation7 + $0x1d8] sm:$0xff]
    %v181 = vld [vmem:[#allocation7 + $0x1e0] sm:$0xff]
    %v182 = vld [vmem:[#allocation7 + $0x1e8] sm:$0xff]
    %v183 = vld [vmem:[#allocation7 + $0x1f0] sm:$0xff]
    %v184 = vld [vmem:[#allocation7 + $0x1f8] sm:$0xff]
    %v185 = vld [vmem:[#allocation7 + $0x200] sm:$0xff]
    %v186 = vld [vmem:[#allocation7 + $0x208] sm:$0xff]
    %v187 = vld [vmem:[#allocation7 + $0x210] sm:$0xff]
    %v188 = vld [vmem:[#allocation7 + $0x218] sm:$0xff]
    %v189 = vld [vmem:[#allocation7 + $0x220] sm:$0xff]
    %v190 = vld [vmem:[#allocation7 + $0x228] sm:$0xff]
    %v191 = vld [vmem:[#allocation7 + $0x230] sm:$0xff]
    %v192 = vld [vmem:[#allocation7 + $0x238] sm:$0xff]
    %v193 = vld [vmem:[#allocation7 + $0x240] sm:$0xff]
    %v194 = vld [vmem:[#allocation7 + $0x248] sm:$0xff]
    %v195 = vld [vmem:[#allocation7 + $0x250] sm:$0xff]
    %v196 = vld [vmem:[#allocation7 + $0x258] sm:$0xff]
    %v197 = vld [vmem:[#allocation7 + $0x260] sm:$0xff]
    %v198 = vld [vmem:[#allocation7 + $0x268] sm:$0xff]
    %v199 = vld [vmem:[#allocation7 + $0x270] sm:$0xff]
    %v200 = vld [vmem:[#allocation7 + $0x278] sm:$0xff]
    %v201 = vld [vmem:[#allocation7 + $0x280] sm:$0xff]
    %v202 = vld [vmem:[#allocation7 + $0x288] sm:$0xff]
    %v203 = vld [vmem:[#allocation7 + $0x290] sm:$0xff]
    %v204 = vld [vmem:[#allocation7 + $0x298] sm:$0xff]
    %v205 = vld [vmem:[#allocation7 + $0x2a0] sm:$0xff]
    %v206 = vld [vmem:[#allocation7 + $0x2a8] sm:$0xff]
    %v207 = vld [vmem:[#allocation7 + $0x2b0] sm:$0xff]
    %v208 = vld [vmem:[#allocation7 + $0x2b8] sm:$0xff]
    %v209 = vld [vmem:[#allocation7 + $0x2c0] sm:$0xff]
    %v210 = vld [vmem:[#allocation7 + $0x2c8] sm:$0xff]
    %v211 = vld [vmem:[#allocation7 + $0x2d0] sm:$0xff]
    %v212 = vld [vmem:[#allocation7 + $0x2d8] sm:$0xff]
    %v213 = vld [vmem:[#allocation7 + $0x2e0] sm:$0xff]
    %v214 = vld [vmem:[#allocation7 + $0x2e8] sm:$0xff]
    %v215 = vld [vmem:[#allocation7 + $0x2f0] sm:$0xff]
    %v216 = vld [vmem:[#allocation7 + $0x2f8] sm:$0xff]
    %v217 = vmul.f32 %v89, %v121
    %v218 = vmul.f32 %v89, %v122
    %v219 = vmul.f32 %v89, %v123
    %v220 = vmul.f32 %v89, %v124
    %v221 = vmul.f32 %v89, %v125
    %v222 = vmul.f32 %v89, %v126
    %v223 = vmul.f32 %v90, %v127
    %v224 = vmul.f32 %v90, %v128
    %v225 = vmul.f32 %v90, %v129
    %v226 = vmul.f32 %v90, %v130
    %v227 = vmul.f32 %v90, %v131
    %v228 = vmul.f32 %v90, %v132
    %v229 = vmul.f32 %v91, %v133
    %v230 = vmul.f32 %v91, %v134
    %v231 = vmul.f32 %v91, %v135
    %v232 = vmul.f32 %v91, %v136
    %v233 = vmul.f32 %v91, %v137
    %v234 = vmul.f32 %v91, %v138
    %v235 = vmul.f32 %v92, %v139
    %v236 = vmul.f32 %v92, %v140
    %v237 = vmul.f32 %v92, %v141
    %v238 = vmul.f32 %v92, %v142
    %v239 = vmul.f32 %v92, %v143
    %v240 = vmul.f32 %v92, %v144
    %v241 = vmul.f32 %v93, %v145
    %v242 = vmul.f32 %v93, %v146
    %v243 = vmul.f32 %v93, %v147
    %v244 = vmul.f32 %v93, %v148
    %v245 = vmul.f32 %v93, %v149
    %v246 = vmul.f32 %v93, %v150
    %v247 = vmul.f32 %v94, %v151
    %v248 = vmul.f32 %v94, %v152
    %v249 = vmul.f32 %v94, %v153
    %v250 = vmul.f32 %v94, %v154
    %v251 = vmul.f32 %v94, %v155
    %v252 = vmul.f32 %v94, %v156
    %v253 = vmul.f32 %v95, %v157
    %v254 = vmul.f32 %v95, %v158
    %v255 = vmul.f32 %v95, %v159
    %v256 = vmul.f32 %v95, %v160
    %v257 = vmul.f32 %v95, %v161
    %v258 = vmul.f32 %v95, %v162
    %v259 = vmul.f32 %v96, %v163
    %v260 = vmul.f32 %v96, %v164
    %v261 = vmul.f32 %v96, %v165
    %v262 = vmul.f32 %v96, %v166
    %v263 = vmul.f32 %v96, %v167
    %v264 = vmul.f32 %v96, %v168
    %v265 = vmul.f32 %v97, %v169
    %v266 = vmul.f32 %v97, %v170
    %v267 = vmul.f32 %v97, %v171
    %v268 = vmul.f32 %v97, %v172
    %v269 = vmul.f32 %v97, %v173
    %v270 = vmul.f32 %v97, %v174
    %v271 = vmul.f32 %v98, %v175
    %v272 = vmul.f32 %v98, %v176
    %v273 = vmul.f32 %v98, %v177
    %v274 = vmul.f32 %v98, %v178
    %v275 = vmul.f32 %v98, %v179
    %v276 = vmul.f32 %v98, %v180
    %v277 = vmul.f32 %v99, %v181
    %v278 = vmul.f32 %v99, %v182
    %v279 = vmul.f32 %v99, %v183
    %v280 = vmul.f32 %v99, %v184
    %v281 = vmul.f32 %v99, %v185
    %v282 = vmul.f32 %v99, %v186
    %v283 = vmul.f32 %v100, %v187
    %v284 = vmul.f32 %v100, %v188
    %v285 = vmul.f32 %v100, %v189
    %v286 = vmul.f32 %v100, %v190
    %v287 = vmul.f32 %v100, %v191
    %v288 = vmul.f32 %v100, %v192
    %v289 = vmul.f32 %v101, %v193
    %v290 = vmul.f32 %v101, %v194
    %v291 = vmul.f32 %v101, %v195
    %v292 = vmul.f32 %v101, %v196
    %v293 = vmul.f32 %v101, %v197
    %v294 = vmul.f32 %v101, %v198
    %v295 = vmul.f32 %v102, %v199
    %v296 = vmul.f32 %v102, %v200
    %v297 = vmul.f32 %v102, %v201
    %v298 = vmul.f32 %v102, %v202
    %v299 = vmul.f32 %v102, %v203
    %v300 = vmul.f32 %v102, %v204
    %v301 = vmul.f32 %v103, %v205
    %v302 = vmul.f32 %v103, %v206
    %v303 = vmul.f32 %v103, %v207
    %v304 = vmul.f32 %v103, %v208
    %v305 = vmul.f32 %v103, %v209
    %v306 = vmul.f32 %v103, %v210
    %v307 = vmul.f32 %v104, %v211
    %v308 = vmul.f32 %v104, %v212
    %v309 = vmul.f32 %v104, %v213
    %v310 = vmul.f32 %v104, %v214
    %v311 = vmul.f32 %v104, %v215
    %v312 = vmul.f32 %v104, %v216
    %v313 = vld [vmem:[#allocation8] sm:$0xff]
    %v314 = vld [vmem:[#allocation8 + $0x8] sm:$0xff]
    %v315 = vld [vmem:[#allocation8 + $0x10] sm:$0xff]
    %v316 = vld [vmem:[#allocation8 + $0x18] sm:$0xff]
    %v317 = vld [vmem:[#allocation8 + $0x20] sm:$0xff]
    %v318 = vld [vmem:[#allocation8 + $0x28] sm:$0xff]
    %v319 = vld [vmem:[#allocation8 + $0x30] sm:$0xff]
    %v320 = vld [vmem:[#allocation8 + $0x38] sm:$0xff]
    %v321 = vld [vmem:[#allocation8 + $0x40] sm:$0xff]
    %v322 = vld [vmem:[#allocation8 + $0x48] sm:$0xff]
    %v323 = vld [vmem:[#allocation8 + $0x50] sm:$0xff]
    %v324 = vld [vmem:[#allocation8 + $0x58] sm:$0xff]
    %v325 = vld [vmem:[#allocation8 + $0x60] sm:$0xff]
    %v326 = vld [vmem:[#allocation8 + $0x68] sm:$0xff]
    %v327 = vld [vmem:[#allocation8 + $0x70] sm:$0xff]
    %v328 = vld [vmem:[#allocation8 + $0x78] sm:$0xff]
    %v329 = vld [vmem:[#allocation8 + $0x80] sm:$0xff]
    %v330 = vld [vmem:[#allocation8 + $0x88] sm:$0xff]
    %v331 = vld [vmem:[#allocation8 + $0x90] sm:$0xff]
    %v332 = vld [vmem:[#allocation8 + $0x98] sm:$0xff]
    %v333 = vld [vmem:[#allocation8 + $0xa0] sm:$0xff]
    %v334 = vld [vmem:[#allocation8 + $0xa8] sm:$0xff]
    %v335 = vld [vmem:[#allocation8 + $0xb0] sm:$0xff]
    %v336 = vld [vmem:[#allocation8 + $0xb8] sm:$0xff]
    %v337 = vld [vmem:[#allocation8 + $0xc0] sm:$0xff]
    %v338 = vld [vmem:[#allocation8 + $0xc8] sm:$0xff]
    %v339 = vld [vmem:[#allocation8 + $0xd0] sm:$0xff]
    %v340 = vld [vmem:[#allocation8 + $0xd8] sm:$0xff]
    %v341 = vld [vmem:[#allocation8 + $0xe0] sm:$0xff]
    %v342 = vld [vmem:[#allocation8 + $0xe8] sm:$0xff]
    %v343 = vld [vmem:[#allocation8 + $0xf0] sm:$0xff]
    %v344 = vld [vmem:[#allocation8 + $0xf8] sm:$0xff]
    %v345 = vld [vmem:[#allocation8 + $0x100] sm:$0xff]
    %v346 = vld [vmem:[#allocation8 + $0x108] sm:$0xff]
    %v347 = vld [vmem:[#allocation8 + $0x110] sm:$0xff]
    %v348 = vld [vmem:[#allocation8 + $0x118] sm:$0xff]
    %v349 = vld [vmem:[#allocation8 + $0x120] sm:$0xff]
    %v350 = vld [vmem:[#allocation8 + $0x128] sm:$0xff]
    %v351 = vld [vmem:[#allocation8 + $0x130] sm:$0xff]
    %v352 = vld [vmem:[#allocation8 + $0x138] sm:$0xff]
    %v353 = vld [vmem:[#allocation8 + $0x140] sm:$0xff]
    %v354 = vld [vmem:[#allocation8 + $0x148] sm:$0xff]
    %v355 = vld [vmem:[#allocation8 + $0x150] sm:$0xff]
    %v356 = vld [vmem:[#allocation8 + $0x158] sm:$0xff]
    %v357 = vld [vmem:[#allocation8 + $0x160] sm:$0xff]
    %v358 = vld [vmem:[#allocation8 + $0x168] sm:$0xff]
    %v359 = vld [vmem:[#allocation8 + $0x170] sm:$0xff]
    %v360 = vld [vmem:[#allocation8 + $0x178] sm:$0xff]
    %v361 = vld [vmem:[#allocation8 + $0x180] sm:$0xff]
    %v362 = vld [vmem:[#allocation8 + $0x188] sm:$0xff]
    %v363 = vld [vmem:[#allocation8 + $0x190] sm:$0xff]
    %v364 = vld [vmem:[#allocation8 + $0x198] sm:$0xff]
    %v365 = vld [vmem:[#allocation8 + $0x1a0] sm:$0xff]
    %v366 = vld [vmem:[#allocation8 + $0x1a8] sm:$0xff]
    %v367 = vld [vmem:[#allocation8 + $0x1b0] sm:$0xff]
    %v368 = vld [vmem:[#allocation8 + $0x1b8] sm:$0xff]
    %v369 = vld [vmem:[#allocation8 + $0x1c0] sm:$0xff]
    %v370 = vld [vmem:[#allocation8 + $0x1c8] sm:$0xff]
    %v371 = vld [vmem:[#allocation8 + $0x1d0] sm:$0xff]
    %v372 = vld [vmem:[#allocation8 + $0x1d8] sm:$0xff]
    %v373 = vld [vmem:[#allocation8 + $0x1e0] sm:$0xff]
    %v374 = vld [vmem:[#allocation8 + $0x1e8] sm:$0xff]
    %v375 = vld [vmem:[#allocation8 + $0x1f0] sm:$0xff]
    %v376 = vld [vmem:[#allocation8 + $0x1f8] sm:$0xff]
    %v377 = vld [vmem:[#allocation8 + $0x200] sm:$0xff]
    %v378 = vld [vmem:[#allocation8 + $0x208] sm:$0xff]
    %v379 = vld [vmem:[#allocation8 + $0x210] sm:$0xff]
    %v380 = vld [vmem:[#allocation8 + $0x218] sm:$0xff]
    %v381 = vld [vmem:[#allocation8 + $0x220] sm:$0xff]
    %v382 = vld [vmem:[#allocation8 + $0x228] sm:$0xff]
    %v383 = vld [vmem:[#allocation8 + $0x230] sm:$0xff]
    %v384 = vld [vmem:[#allocation8 + $0x238] sm:$0xff]
    %v385 = vld [vmem:[#allocation8 + $0x240] sm:$0xff]
    %v386 = vld [vmem:[#allocation8 + $0x248] sm:$0xff]
    %v387 = vld [vmem:[#allocation8 + $0x250] sm:$0xff]
    %v388 = vld [vmem:[#allocation8 + $0x258] sm:$0xff]
    %v389 = vld [vmem:[#allocation8 + $0x260] sm:$0xff]
    %v390 = vld [vmem:[#allocation8 + $0x268] sm:$0xff]
    %v391 = vld [vmem:[#allocation8 + $0x270] sm:$0xff]
    %v392 = vld [vmem:[#allocation8 + $0x278] sm:$0xff]
    %v393 = vld [vmem:[#allocation8 + $0x280] sm:$0xff]
    %v394 = vld [vmem:[#allocation8 + $0x288] sm:$0xff]
    %v395 = vld [vmem:[#allocation8 + $0x290] sm:$0xff]
    %v396 = vld [vmem:[#allocation8 + $0x298] sm:$0xff]
    %v397 = vld [vmem:[#allocation8 + $0x2a0] sm:$0xff]
    %v398 = vld [vmem:[#allocation8 + $0x2a8] sm:$0xff]
    %v399 = vld [vmem:[#allocation8 + $0x2b0] sm:$0xff]
    %v400 = vld [vmem:[#allocation8 + $0x2b8] sm:$0xff]
    %v401 = vld [vmem:[#allocation8 + $0x2c0] sm:$0xff]
    %v402 = vld [vmem:[#allocation8 + $0x2c8] sm:$0xff]
    %v403 = vld [vmem:[#allocation8 + $0x2d0] sm:$0xff]
    %v404 = vld [vmem:[#allocation8 + $0x2d8] sm:$0xff]
    %v405 = vld [vmem:[#allocation8 + $0x2e0] sm:$0xff]
    %v406 = vld [vmem:[#allocation8 + $0x2e8] sm:$0xff]
    %v407 = vld [vmem:[#allocation8 + $0x2f0] sm:$0xff]
    %v408 = vld [vmem:[#allocation8 + $0x2f8] sm:$0xff]
    %v409 = vld [vmem:[#allocation10] sm:$0xff]
    %v410 = vld [vmem:[#allocation10 + $0x8] sm:$0xff]
    %v411 = vld [vmem:[#allocation10 + $0x10] sm:$0xff]
    %v412 = vld [vmem:[#allocation10 + $0x18] sm:$0xff]
    %v413 = vld [vmem:[#allocation10 + $0x20] sm:$0xff]
    %v414 = vld [vmem:[#allocation10 + $0x28] sm:$0xff]
    %v415 = vld [vmem:[#allocation10 + $0x30] sm:$0xff]
    %v416 = vld [vmem:[#allocation10 + $0x38] sm:$0xff]
    %v417 = vld [vmem:[#allocation10 + $0x40] sm:$0xff]
    %v418 = vld [vmem:[#allocation10 + $0x48] sm:$0xff]
    %v419 = vld [vmem:[#allocation10 + $0x50] sm:$0xff]
    %v420 = vld [vmem:[#allocation10 + $0x58] sm:$0xff]
    %v421 = vld [vmem:[#allocation10 + $0x60] sm:$0xff]
    %v422 = vld [vmem:[#allocation10 + $0x68] sm:$0xff]
    %v423 = vld [vmem:[#allocation10 + $0x70] sm:$0xff]
    %v424 = vld [vmem:[#allocation10 + $0x78] sm:$0xff]
    %425 = vmatprep.subr.mxu0 0.0
    %426 = vmatpush1.msra.mxu0 %v313
    %427 = vmatprep.subr.mxu0 0.0
    %428 = vmatpush1.msra.mxu0 %v314
    %429 = vmatprep.subr.mxu0 0.0
    %430 = vmatpush1.msra.mxu0 %v315
    %431 = vmatprep.subr.mxu0 0.0
    %432 = vmatpush1.msra.mxu0 %v316
    %433 = vmatprep.subr.mxu0 0.0
    %434 = vmatpush1.msra.mxu0 %v317
    %435 = vmatprep.subr.mxu0 0.0
    %436 = vmatpush1.msra.mxu0 %v318
    %437 = vmatprep.subr.mxu0 0.0
    %438 = vmatpush1.msra.mxu0 %v319
    %439 = vmatprep.subr.mxu0 0.0
    %440 = vmatpush1.msra.mxu0 %v320
    %441 = vmatprep.subr.mxu0 0.0
    %442 = vmatpush1.msra.mxu0 %v321
    %443 = vmatprep.subr.mxu0 0.0
    %444 = vmatpush1.msra.mxu0 %v322
    %445 = vmatprep.subr.mxu0 0.0
    %446 = vmatpush1.msra.mxu0 %v323
    %447 = vmatprep.subr.mxu0 0.0
    %448 = vmatpush1.msra.mxu0 %v324
    %449 = vmatprep.subr.mxu0 0.0
    %450 = vmatpush1.msra.mxu0 %v325
    %451 = vmatprep.subr.mxu0 0.0
    %452 = vmatpush1.msra.mxu0 %v326
    %453 = vmatprep.subr.mxu0 0.0
    %454 = vmatpush1.msra.mxu0 %v327
    %455 = vmatprep.subr.mxu0 0.0
    %456 = vmatpush1.msra.mxu0 %v328
    %457 = vmatprep.subr.mxu0 0.0
    %458 = vmatpush1.msra.mxu0 %v329
    %459 = vmatprep.subr.mxu0 0.0
    %460 = vmatpush1.msra.mxu0 %v330
    %461 = vmatprep.subr.mxu0 0.0
    %462 = vmatpush1.msra.mxu0 %v331
    %463 = vmatprep.subr.mxu0 0.0
    %464 = vmatpush1.msra.mxu0 %v332
    %465 = vmatprep.subr.mxu0 0.0
    %466 = vmatpush1.msra.mxu0 %v333
    %467 = vmatprep.subr.mxu0 0.0
    %468 = vmatpush1.msra.mxu0 %v334
    %469 = vmatprep.subr.mxu0 0.0
    %470 = vmatpush1.msra.mxu0 %v335
    %471 = vmatprep.subr.mxu0 0.0
    %472 = vmatpush1.msra.mxu0 %v336
    %473 = vmatprep.subr.mxu0 0.0
    %474 = vmatpush1.msra.mxu0 %v337
    %475 = vmatprep.subr.mxu0 0.0
    %476 = vmatpush1.msra.mxu0 %v338
    %477 = vmatprep.subr.mxu0 0.0
    %478 = vmatpush1.msra.mxu0 %v339
    %479 = vmatprep.subr.mxu0 0.0
    %480 = vmatpush1.msra.mxu0 %v340
    %481 = vmatprep.subr.mxu0 0.0
    %482 = vmatpush1.msra.mxu0 %v341
    %483 = vmatprep.subr.mxu0 0.0
    %484 = vmatpush1.msra.mxu0 %v342
    %485 = vmatprep.subr.mxu0 0.0
    %486 = vmatpush1.msra.mxu0 %v343
    %487 = vmatprep.subr.mxu0 0.0
    %488 = vmatpush1.msra.mxu0 %v344
    %489 = vmatprep.mubr.f32.mxu0 %v218
    %490 = vmatmul.mubr.f32.gmra.mrb[0].mxu0 %v217
    %v491 = vpop.f32.mrb[0].mxu0
    %v492 = vadd.f32 %v409, %v491
    %v493 = vpop.f32.mrb[0].mxu0
    %494 = vmatprep.mubr.f32.mxu0 %v224
    %495 = vmatmul.mubr.f32.gmra.mrb[0].mxu0 %v223
    %v496 = vpop.f32.mrb[0].mxu0
    %v497 = vadd.f32 %v410, %v496
    %v498 = vpop.f32.mrb[0].mxu0
    %499 = vmatprep.mubr.f32.mxu0 %v230
    %500 = vmatmul.mubr.f32.gmra.mrb[0].mxu0 %v229
    %v501 = vpop.f32.mrb[0].mxu0
    %v502 = vadd.f32 %v411, %v501
    %v503 = vpop.f32.mrb[0].mxu0
    %504 = vmatprep.mubr.f32.mxu0 %v236
    %505 = vmatmul.mubr.f32.gmra.mrb[0].mxu0 %v235
    %v506 = vpop.f32.mrb[0].mxu0
    %v507 = vadd.f32 %v412, %v506
    %v508 = vpop.f32.mrb[0].mxu0
    %509 = vmatprep.mubr.f32.mxu0 %v242
    %510 = vmatmul.mubr.f32.gmra.mrb[0].mxu0 %v241
    %v511 = vpop.f32.mrb[0].mxu0
    %v512 = vadd.f32 %v413, %v511
    %v513 = vpop.f32.mrb[0].mxu0
    %514 = vmatprep.mubr.f32.mxu0 %v248
    %515 = vmatmul.mubr.f32.gmra.mrb[0].mxu0 %v247
    %v516 = vpop.f32.mrb[0].mxu0
    %v517 = vadd.f32 %v414, %v516
    %v518 = vpop.f32.mrb[0].mxu0
    %519 = vmatprep.mubr.f32.mxu0 %v254
    %520 = vmatmul.mubr.f32.gmra.mrb[0].mxu0 %v253
    %v521 = vpop.f32.mrb[0].mxu0
    %v522 = vadd.f32 %v415, %v521
    %v523 = vpop.f32.mrb[0].mxu0
    %524 = vmatprep.mubr.f32.mxu0 %v260
    %525 = vmatmul.mubr.f32.gmra.mrb[0].mxu0 %v259
    %v526 = vpop.f32.mrb[0].mxu0
    %v527 = vadd.f32 %v416, %v526
    %v528 = vpop.f32.mrb[0].mxu0
    %529 = vmatprep.mubr.f32.mxu0 %v266
    %530 = vmatmul.mubr.f32.gmra.mrb[0].mxu0 %v265
    %v531 = vpop.f32.mrb[0].mxu0
    %v532 = vadd.f32 %v417, %v531
    %v533 = vpop.f32.mrb[0].mxu0
    %534 = vmatprep.mubr.f32.mxu0 %v272
    %535 = vmatmul.mubr.f32.gmra.mrb[0].mxu0 %v271
    %v536 = vpop.f32.mrb[0].mxu0
    %v537 = vadd.f32 %v418, %v536
    %v538 = vpop.f32.mrb[0].mxu0
    %539 = vmatprep.mubr.f32.mxu0 %v278
    %540 = vmatmul.mubr.f32.gmra.mrb[0].mxu0 %v277
    %v541 = vpop.f32.mrb[0].mxu0
    %v542 = vadd.f32 %v419, %v541
    %v543 = vpop.f32.mrb[0].mxu0
    %544 = vmatprep.mubr.f32.mxu0 %v284
    %545 = vmatmul.mubr.f32.gmra.mrb[0].mxu0 %v283
    %v546 = vpop.f32.mrb[0].mxu0
    %v547 = vadd.f32 %v420, %v546
    %v548 = vpop.f32.mrb[0].mxu0
    %549 = vmatprep.mubr.f32.mxu0 %v290
    %550 = vmatmul.mubr.f32.gmra.mrb[0].mxu0 %v289
    %v551 = vpop.f32.mrb[0].mxu0
    %v552 = vadd.f32 %v421, %v551
    %v553 = vpop.f32.mrb[0].mxu0
    %554 = vmatprep.mubr.f32.mxu0 %v296
    %555 = vmatmul.mubr.f32.gmra.mrb[0].mxu0 %v295
    %v556 = vpop.f32.mrb[0].mxu0
    %v557 = vadd.f32 %v422, %v556
    %v558 = vpop.f32.mrb[0].mxu0
    %559 = vmatprep.mubr.f32.mxu0 %v302
    %560 = vmatmul.mubr.f32.gmra.mrb[0].mxu0 %v301
    %v561 = vpop.f32.mrb[0].mxu0
    %v562 = vadd.f32 %v423, %v561
    %v563 = vpop.f32.mrb[0].mxu0
    %564 = vmatprep.mubr.f32.mxu0 %v308
    %565 = vmatmul.mubr.f32.gmra.mrb[0].mxu0 %v307
    %v566 = vpop.f32.mrb[0].mxu0
    %v567 = vadd.f32 %v424, %v566
    %v568 = vpop.f32.mrb[0].mxu0
    %569 = vdwg.mxu0
    %570 = vmatprep.subr.mxu0 0.0
    %571 = vmatpush1.msra.mxu0 %v345
    %572 = vmatprep.subr.mxu0 0.0
    %573 = vmatpush1.msra.mxu0 %v346
    %574 = vmatprep.subr.mxu0 0.0
    %575 = vmatpush1.msra.mxu0 %v347
    %576 = vmatprep.subr.mxu0 0.0
    %577 = vmatpush1.msra.mxu0 %v348
    %578 = vmatprep.subr.mxu0 0.0
    %579 = vmatpush1.msra.mxu0 %v349
    %580 = vmatprep.subr.mxu0 0.0
    %581 = vmatpush1.msra.mxu0 %v350
    %582 = vmatprep.subr.mxu0 0.0
    %583 = vmatpush1.msra.mxu0 %v351
    %584 = vmatprep.subr.mxu0 0.0
    %585 = vmatpush1.msra.mxu0 %v352
    %586 = vmatprep.subr.mxu0 0.0
    %587 = vmatpush1.msra.mxu0 %v353
    %588 = vmatprep.subr.mxu0 0.0
    %589 = vmatpush1.msra.mxu0 %v354
    %590 = vmatprep.subr.mxu0 0.0
    %591 = vmatpush1.msra.mxu0 %v355
    %592 = vmatprep.subr.mxu0 0.0
    %593 = vmatpush1.msra.mxu0 %v356
    %594 = vmatprep.subr.mxu0 0.0
    %595 = vmatpush1.msra.mxu0 %v357
    %596 = vmatprep.subr.mxu0 0.0
    %597 = vmatpush1.msra.mxu0 %v358
    %598 = vmatprep.subr.mxu0 0.0
    %599 = vmatpush1.msra.mxu0 %v359
    %600 = vmatprep.subr.mxu0 0.0
    %601 = vmatpush1.msra.mxu0 %v360
    %602 = vmatprep.subr.mxu0 0.0
    %603 = vmatpush1.msra.mxu0 %v361
    %604 = vmatprep.subr.mxu0 0.0
    %605 = vmatpush1.msra.mxu0 %v362
    %606 = vmatprep.subr.mxu0 0.0
    %607 = vmatpush1.msra.mxu0 %v363
    %608 = vmatprep.subr.mxu0 0.0
    %609 = vmatpush1.msra.mxu0 %v364
    %610 = vmatprep.subr.mxu0 0.0
    %611 = vmatpush1.msra.mxu0 %v365
    %612 = vmatprep.subr.mxu0 0.0
    %613 = vmatpush1.msra.mxu0 %v366
    %614 = vmatprep.subr.mxu0 0.0
    %615 = vmatpush1.msra.mxu0 %v367
    %616 = vmatprep.subr.mxu0 0.0
    %617 = vmatpush1.msra.mxu0 %v368
    %618 = vmatprep.subr.mxu0 0.0
    %619 = vmatpush1.msra.mxu0 %v369
    %620 = vmatprep.subr.mxu0 0.0
    %621 = vmatpush1.msra.mxu0 %v370
    %622 = vmatprep.subr.mxu0 0.0
    %623 = vmatpush1.msra.mxu0 %v371
    %624 = vmatprep.subr.mxu0 0.0
    %625 = vmatpush1.msra.mxu0 %v372
    %626 = vmatprep.subr.mxu0 0.0
    %627 = vmatpush1.msra.mxu0 %v373
    %628 = vmatprep.subr.mxu0 0.0
    %629 = vmatpush1.msra.mxu0 %v374
    %630 = vmatprep.subr.mxu0 0.0
    %631 = vmatpush1.msra.mxu0 %v375
    %632 = vmatprep.subr.mxu0 0.0
    %633 = vmatpush1.msra.mxu0 %v376
    %634 = vmatprep.mubr.f32.mxu0 %v220
    %635 = vmatmul.mubr.f32.gmra.mrb[0].mxu0 %v219
    %v636 = vpop.f32.mrb[0].mxu0
    %v637 = vadd.f32 %v492, %v636
    %v638 = vpop.f32.mrb[0].mxu0
    %639 = vmatprep.mubr.f32.mxu0 %v226
    %640 = vmatmul.mubr.f32.gmra.mrb[0].mxu0 %v225
    %v641 = vpop.f32.mrb[0].mxu0
    %v642 = vadd.f32 %v497, %v641
    %v643 = vpop.f32.mrb[0].mxu0
    %644 = vmatprep.mubr.f32.mxu0 %v232
    %645 = vmatmul.mubr.f32.gmra.mrb[0].mxu0 %v231
    %v646 = vpop.f32.mrb[0].mxu0
    %v647 = vadd.f32 %v502, %v646
    %v648 = vpop.f32.mrb[0].mxu0
    %649 = vmatprep.mubr.f32.mxu0 %v238
    %650 = vmatmul.mubr.f32.gmra.mrb[0].mxu0 %v237
    %v651 = vpop.f32.mrb[0].mxu0
    %v652 = vadd.f32 %v507, %v651
    %v653 = vpop.f32.mrb[0].mxu0
    %654 = vmatprep.mubr.f32.mxu0 %v244
    %655 = vmatmul.mubr.f32.gmra.mrb[0].mxu0 %v243
    %v656 = vpop.f32.mrb[0].mxu0
    %v657 = vadd.f32 %v512, %v656
    %v658 = vpop.f32.mrb[0].mxu0
    %659 = vmatprep.mubr.f32.mxu0 %v250
    %660 = vmatmul.mubr.f32.gmra.mrb[0].mxu0 %v249
    %v661 = vpop.f32.mrb[0].mxu0
    %v662 = vadd.f32 %v517, %v661
    %v663 = vpop.f32.mrb[0].mxu0
    %664 = vmatprep.mubr.f32.mxu0 %v256
    %665 = vmatmul.mubr.f32.gmra.mrb[0].mxu0 %v255
    %v666 = vpop.f32.mrb[0].mxu0
    %v667 = vadd.f32 %v522, %v666
    %v668 = vpop.f32.mrb[0].mxu0
    %669 = vmatprep.mubr.f32.mxu0 %v262
    %670 = vmatmul.mubr.f32.gmra.mrb[0].mxu0 %v261
    %v671 = vpop.f32.mrb[0].mxu0
    %v672 = vadd.f32 %v527, %v671
    %v673 = vpop.f32.mrb[0].mxu0
    %674 = vmatprep.mubr.f32.mxu0 %v268
    %675 = vmatmul.mubr.f32.gmra.mrb[0].mxu0 %v267
    %v676 = vpop.f32.mrb[0].mxu0
    %v677 = vadd.f32 %v532, %v676
    %v678 = vpop.f32.mrb[0].mxu0
    %679 = vmatprep.mubr.f32.mxu0 %v274
    %680 = vmatmul.mubr.f32.gmra.mrb[0].mxu0 %v273
    %v681 = vpop.f32.mrb[0].mxu0
    %v682 = vadd.f32 %v537, %v681
    %v683 = vpop.f32.mrb[0].mxu0
    %684 = vmatprep.mubr.f32.mxu0 %v280
    %685 = vmatmul.mubr.f32.gmra.mrb[0].mxu0 %v279
    %v686 = vpop.f32.mrb[0].mxu0
    %v687 = vadd.f32 %v542, %v686
    %v688 = vpop.f32.mrb[0].mxu0
    %689 = vmatprep.mubr.f32.mxu0 %v286
    %690 = vmatmul.mubr.f32.gmra.mrb[0].mxu0 %v285
    %v691 = vpop.f32.mrb[0].mxu0
    %v692 = vadd.f32 %v547, %v691
    %v693 = vpop.f32.mrb[0].mxu0
    %694 = vmatprep.mubr.f32.mxu0 %v292
    %695 = vmatmul.mubr.f32.gmra.mrb[0].mxu0 %v291
    %v696 = vpop.f32.mrb[0].mxu0
    %v697 = vadd.f32 %v552, %v696
    %v698 = vpop.f32.mrb[0].mxu0
    %699 = vmatprep.mubr.f32.mxu0 %v298
    %700 = vmatmul.mubr.f32.gmra.mrb[0].mxu0 %v297
    %v701 = vpop.f32.mrb[0].mxu0
    %v702 = vadd.f32 %v557, %v701
    %v703 = vpop.f32.mrb[0].mxu0
    %704 = vmatprep.mubr.f32.mxu0 %v304
    %705 = vmatmul.mubr.f32.gmra.mrb[0].mxu0 %v303
    %v706 = vpop.f32.mrb[0].mxu0
    %v707 = vadd.f32 %v562, %v706
    %v708 = vpop.f32.mrb[0].mxu0
    %709 = vmatprep.mubr.f32.mxu0 %v310
    %710 = vmatmul.mubr.f32.gmra.mrb[0].mxu0 %v309
    %v711 = vpop.f32.mrb[0].mxu0
    %v712 = vadd.f32 %v567, %v711
    %v713 = vpop.f32.mrb[0].mxu0
    %714 = vdwg.mxu0
    %715 = vmatprep.subr.mxu0 0.0
    %716 = vmatpush1.msra.mxu0 %v377
    %717 = vmatprep.subr.mxu0 0.0
    %718 = vmatpush1.msra.mxu0 %v378
    %719 = vmatprep.subr.mxu0 0.0
    %720 = vmatpush1.msra.mxu0 %v379
    %721 = vmatprep.subr.mxu0 0.0
    %722 = vmatpush1.msra.mxu0 %v380
    %723 = vmatprep.subr.mxu0 0.0
    %724 = vmatpush1.msra.mxu0 %v381
    %725 = vmatprep.subr.mxu0 0.0
    %726 = vmatpush1.msra.mxu0 %v382
    %727 = vmatprep.subr.mxu0 0.0
    %728 = vmatpush1.msra.mxu0 %v383
    %729 = vmatprep.subr.mxu0 0.0
    %730 = vmatpush1.msra.mxu0 %v384
    %731 = vmatprep.subr.mxu0 0.0
    %732 = vmatpush1.msra.mxu0 %v385
    %733 = vmatprep.subr.mxu0 0.0
    %734 = vmatpush1.msra.mxu0 %v386
    %735 = vmatprep.subr.mxu0 0.0
    %736 = vmatpush1.msra.mxu0 %v387
    %737 = vmatprep.subr.mxu0 0.0
    %738 = vmatpush1.msra.mxu0 %v388
    %739 = vmatprep.subr.mxu0 0.0
    %740 = vmatpush1.msra.mxu0 %v389
    %741 = vmatprep.subr.mxu0 0.0
    %742 = vmatpush1.msra.mxu0 %v390
    %743 = vmatprep.subr.mxu0 0.0
    %744 = vmatpush1.msra.mxu0 %v391
    %745 = vmatprep.subr.mxu0 0.0
    %746 = vmatpush1.msra.mxu0 %v392
    %747 = vmatprep.subr.mxu0 0.0
    %748 = vmatpush1.msra.mxu0 %v393
    %749 = vmatprep.subr.mxu0 0.0
    %750 = vmatpush1.msra.mxu0 %v394
    %751 = vmatprep.subr.mxu0 0.0
    %752 = vmatpush1.msra.mxu0 %v395
    %753 = vmatprep.subr.mxu0 0.0
    %754 = vmatpush1.msra.mxu0 %v396
    %755 = vmatprep.subr.mxu0 0.0
    %756 = vmatpush1.msra.mxu0 %v397
    %757 = vmatprep.subr.mxu0 0.0
    %758 = vmatpush1.msra.mxu0 %v398
    %759 = vmatprep.subr.mxu0 0.0
    %760 = vmatpush1.msra.mxu0 %v399
    %761 = vmatprep.subr.mxu0 0.0
    %762 = vmatpush1.msra.mxu0 %v400
    %763 = vmatprep.subr.mxu0 0.0
    %764 = vmatpush1.msra.mxu0 %v401
    %765 = vmatprep.subr.mxu0 0.0
    %766 = vmatpush1.msra.mxu0 %v402
    %767 = vmatprep.subr.mxu0 0.0
    %768 = vmatpush1.msra.mxu0 %v403
    %769 = vmatprep.subr.mxu0 0.0
    %770 = vmatpush1.msra.mxu0 %v404
    %771 = vmatprep.subr.mxu0 0.0
    %772 = vmatpush1.msra.mxu0 %v405
    %773 = vmatprep.subr.mxu0 0.0
    %774 = vmatpush1.msra.mxu0 %v406
    %775 = vmatprep.subr.mxu0 0.0
    %776 = vmatpush1.msra.mxu0 %v407
    %777 = vmatprep.subr.mxu0 0.0
    %778 = vmatpush1.msra.mxu0 %v408
    %779 = vmatprep.mubr.f32.mxu0 %v222
    %780 = vmatmul.mubr.f32.gmra.mrb[0].mxu0 %v221
    %v781 = vpop.f32.mrb[0].mxu0
    %v782 = vadd.f32 %v637, %v781
    %v783 = vpop.f32.mrb[0].mxu0
    %784 = vmatprep.mubr.f32.mxu0 %v228
    %785 = vmatmul.mubr.f32.gmra.mrb[0].mxu0 %v227
    %v786 = vpop.f32.mrb[0].mxu0
    %v787 = vadd.f32 %v642, %v786
    %v788 = vpop.f32.mrb[0].mxu0
    %789 = vmatprep.mubr.f32.mxu0 %v234
    %790 = vmatmul.mubr.f32.gmra.mrb[0].mxu0 %v233
    %v791 = vpop.f32.mrb[0].mxu0
    %v792 = vadd.f32 %v647, %v791
    %v793 = vpop.f32.mrb[0].mxu0
    %794 = vmatprep.mubr.f32.mxu0 %v240
    %795 = vmatmul.mubr.f32.gmra.mrb[0].mxu0 %v239
    %v796 = vpop.f32.mrb[0].mxu0
    %v797 = vadd.f32 %v652, %v796
    %v798 = vpop.f32.mrb[0].mxu0
    %799 = vmatprep.mubr.f32.mxu0 %v246
    %800 = vmatmul.mubr.f32.gmra.mrb[0].mxu0 %v245
    %v801 = vpop.f32.mrb[0].mxu0
    %v802 = vadd.f32 %v657, %v801
    %v803 = vpop.f32.mrb[0].mxu0
    %804 = vmatprep.mubr.f32.mxu0 %v252
    %805 = vmatmul.mubr.f32.gmra.mrb[0].mxu0 %v251
    %v806 = vpop.f32.mrb[0].mxu0
    %v807 = vadd.f32 %v662, %v806
    %v808 = vpop.f32.mrb[0].mxu0
    %809 = vmatprep.mubr.f32.mxu0 %v258
    %810 = vmatmul.mubr.f32.gmra.mrb[0].mxu0 %v257
    %v811 = vpop.f32.mrb[0].mxu0
    %v812 = vadd.f32 %v667, %v811
    %v813 = vpop.f32.mrb[0].mxu0
    %814 = vmatprep.mubr.f32.mxu0 %v264
    %815 = vmatmul.mubr.f32.gmra.mrb[0].mxu0 %v263
    %v816 = vpop.f32.mrb[0].mxu0
    %v817 = vadd.f32 %v672, %v816
    %v818 = vpop.f32.mrb[0].mxu0
    %819 = vmatprep.mubr.f32.mxu0 %v270
    %820 = vmatmul.mubr.f32.gmra.mrb[0].mxu0 %v269
    %v821 = vpop.f32.mrb[0].mxu0
    %v822 = vadd.f32 %v677, %v821
    %v823 = vpop.f32.mrb[0].mxu0
    %824 = vmatprep.mubr.f32.mxu0 %v276
    %825 = vmatmul.mubr.f32.gmra.mrb[0].mxu0 %v275
    %v826 = vpop.f32.mrb[0].mxu0
    %v827 = vadd.f32 %v682, %v826
    %v828 = vpop.f32.mrb[0].mxu0
    %829 = vmatprep.mubr.f32.mxu0 %v282
    %830 = vmatmul.mubr.f32.gmra.mrb[0].mxu0 %v281
    %v831 = vpop.f32.mrb[0].mxu0
    %v832 = vadd.f32 %v687, %v831
    %v833 = vpop.f32.mrb[0].mxu0
    %834 = vmatprep.mubr.f32.mxu0 %v288
    %835 = vmatmul.mubr.f32.gmra.mrb[0].mxu0 %v287
    %v836 = vpop.f32.mrb[0].mxu0
    %v837 = vadd.f32 %v692, %v836
    %v838 = vpop.f32.mrb[0].mxu0
    %839 = vmatprep.mubr.f32.mxu0 %v294
    %840 = vmatmul.mubr.f32.gmra.mrb[0].mxu0 %v293
    %v841 = vpop.f32.mrb[0].mxu0
    %v842 = vadd.f32 %v697, %v841
    %v843 = vpop.f32.mrb[0].mxu0
    %844 = vmatprep.mubr.f32.mxu0 %v300
    %845 = vmatmul.mubr.f32.gmra.mrb[0].mxu0 %v299
    %v846 = vpop.f32.mrb[0].mxu0
    %v847 = vadd.f32 %v702, %v846
    %v848 = vpop.f32.mrb[0].mxu0
    %849 = vmatprep.mubr.f32.mxu0 %v306
    %850 = vmatmul.mubr.f32.gmra.mrb[0].mxu0 %v305
    %v851 = vpop.f32.mrb[0].mxu0
    %v852 = vadd.f32 %v707, %v851
    %v853 = vpop.f32.mrb[0].mxu0
    %854 = vmatprep.mubr.f32.mxu0 %v312
    %855 = vmatmul.mubr.f32.gmra.mrb[0].mxu0 %v311
    %v856 = vpop.f32.mrb[0].mxu0
    %v857 = vadd.f32 %v712, %v856
    %v858 = vpop.f32.mrb[0].mxu0
    %859 = vdwg.mxu0
    %860 = vmatprep.subr.mxu0 0.0
    %861 = vmatpush1.msra.mxu0 %v782
    %862 = vmatprep.subr.mxu0 0.0
    %863 = vmatpush1.msra.mxu0 %v787
    %864 = vmatprep.subr.mxu0 0.0
    %865 = vmatpush1.msra.mxu0 %v792
    %866 = vmatprep.subr.mxu0 0.0
    %867 = vmatpush1.msra.mxu0 %v797
    %868 = vmatprep.subr.mxu0 0.0
    %869 = vmatpush1.msra.mxu0 %v802
    %870 = vmatprep.subr.mxu0 0.0
    %871 = vmatpush1.msra.mxu0 %v807
    %872 = vmatprep.subr.mxu0 0.0
    %873 = vmatpush1.msra.mxu0 %v812
    %874 = vmatprep.subr.mxu0 0.0
    %875 = vmatpush1.msra.mxu0 %v817
    %876 = vmatprep.subr.mxu0 0.0
    %877 = vmatpush1.msra.mxu0 %v822
    %878 = vmatprep.subr.mxu0 0.0
    %879 = vmatpush1.msra.mxu0 %v827
    %880 = vmatprep.subr.mxu0 0.0
    %881 = vmatpush1.msra.mxu0 %v832
    %882 = vmatprep.subr.mxu0 0.0
    %883 = vmatpush1.msra.mxu0 %v837
    %884 = vmatprep.subr.mxu0 0.0
    %885 = vmatpush1.msra.mxu0 %v842
    %886 = vmatprep.subr.mxu0 0.0
    %887 = vmatpush1.msra.mxu0 %v847
    %888 = vmatprep.subr.mxu0 0.0
    %889 = vmatpush1.msra.mxu0 %v852
    %890 = vmatprep.subr.mxu0 0.0
    %891 = vmatpush1.msra.mxu0 %v857
    %892 = vmatprep.subr.mxu0 0.0
    %893 = vmatpush1.msra.mxu0 0.0
    %894 = vmatprep.subr.mxu0 0.0
    %895 = vmatpush1.msra.mxu0 0.0
    %896 = vmatprep.subr.mxu0 0.0
    %897 = vmatpush1.msra.mxu0 0.0
    %898 = vmatprep.subr.mxu0 0.0
    %899 = vmatpush1.msra.mxu0 0.0
    %900 = vmatprep.subr.mxu0 0.0
    %901 = vmatpush1.msra.mxu0 0.0
    %902 = vmatprep.subr.mxu0 0.0
    %903 = vmatpush1.msra.mxu0 0.0
    %904 = vmatprep.subr.mxu0 0.0
    %905 = vmatpush1.msra.mxu0 0.0
    %906 = vmatprep.subr.mxu0 0.0
    %907 = vmatpush1.msra.mxu0 0.0
    %908 = vmatprep.subr.mxu0 0.0
    %909 = vmatpush1.msra.mxu0 0.0
    %910 = vmatprep.subr.mxu0 0.0
    %911 = vmatpush1.msra.mxu0 0.0
    %912 = vmatprep.subr.mxu0 0.0
    %913 = vmatpush1.msra.mxu0 0.0
    %914 = vmatprep.subr.mxu0 0.0
    %915 = vmatpush1.msra.mxu0 0.0
    %916 = vmatprep.subr.mxu0 0.0
    %917 = vmatpush1.msra.mxu0 0.0
    %918 = vmatprep.subr.mxu0 0.0
    %919 = vmatpush1.msra.mxu0 0.0
    %920 = vmatprep.subr.mxu0 0.0
    %921 = vmatpush1.msra.mxu0 0.0
    %922 = vmatprep.subr.mxu0 0.0
    %923 = vmatpush1.msra.mxu0 0.0
    %924 = vmatprep.mubr.f32.mxu0 0.0
    %925 = vmatmul.mubr.f32.gmra.mrb[0].mxu0 %v105
    %v926 = vpop.f32.mrb[0].mxu0
    %v927 = vadd.f32 0.0, %v926
    %v928 = vpop.f32.mrb[0].mxu0
    %929 = vmatprep.mubr.f32.mxu0 0.0
    %930 = vmatmul.mubr.f32.gmra.mrb[0].mxu0 %v106
    %v931 = vpop.f32.mrb[0].mxu0
    %v932 = vadd.f32 0.0, %v931
    %v933 = vpop.f32.mrb[0].mxu0
    %934 = vmatprep.mubr.f32.mxu0 0.0
    %935 = vmatmul.mubr.f32.gmra.mrb[0].mxu0 %v107
    %v936 = vpop.f32.mrb[0].mxu0
    %v937 = vadd.f32 0.0, %v936
    %v938 = vpop.f32.mrb[0].mxu0
    %939 = vmatprep.mubr.f32.mxu0 0.0
    %940 = vmatmul.mubr.f32.gmra.mrb[0].mxu0 %v108
    %v941 = vpop.f32.mrb[0].mxu0
    %v942 = vadd.f32 0.0, %v941
    %v943 = vpop.f32.mrb[0].mxu0
    %944 = vmatprep.mubr.f32.mxu0 0.0
    %945 = vmatmul.mubr.f32.gmra.mrb[0].mxu0 %v109
    %v946 = vpop.f32.mrb[0].mxu0
    %v947 = vadd.f32 0.0, %v946
    %v948 = vpop.f32.mrb[0].mxu0
    %949 = vmatprep.mubr.f32.mxu0 0.0
    %950 = vmatmul.mubr.f32.gmra.mrb[0].mxu0 %v110
    %v951 = vpop.f32.mrb[0].mxu0
    %v952 = vadd.f32 0.0, %v951
    %v953 = vpop.f32.mrb[0].mxu0
    %954 = vmatprep.mubr.f32.mxu0 0.0
    %955 = vmatmul.mubr.f32.gmra.mrb[0].mxu0 %v111
    %v956 = vpop.f32.mrb[0].mxu0
    %v957 = vadd.f32 0.0, %v956
    %v958 = vpop.f32.mrb[0].mxu0
    %959 = vmatprep.mubr.f32.mxu0 0.0
    %960 = vmatmul.mubr.f32.gmra.mrb[0].mxu0 %v112
    %v961 = vpop.f32.mrb[0].mxu0
    %v962 = vadd.f32 0.0, %v961
    %v963 = vpop.f32.mrb[0].mxu0
    %964 = vmatprep.mubr.f32.mxu0 0.0
    %965 = vmatmul.mubr.f32.gmra.mrb[0].mxu0 %v113
    %v966 = vpop.f32.mrb[0].mxu0
    %v967 = vadd.f32 0.0, %v966
    %v968 = vpop.f32.mrb[0].mxu0
    %969 = vmatprep.mubr.f32.mxu0 0.0
    %970 = vmatmul.mubr.f32.gmra.mrb[0].mxu0 %v114
    %v971 = vpop.f32.mrb[0].mxu0
    %v972 = vadd.f32 0.0, %v971
    %v973 = vpop.f32.mrb[0].mxu0
    %974 = vmatprep.mubr.f32.mxu0 0.0
    %975 = vmatmul.mubr.f32.gmra.mrb[0].mxu0 %v115
    %v976 = vpop.f32.mrb[0].mxu0
    %v977 = vadd.f32 0.0, %v976
    %v978 = vpop.f32.mrb[0].mxu0
    %979 = vmatprep.mubr.f32.mxu0 0.0
    %980 = vmatmul.mubr.f32.gmra.mrb[0].mxu0 %v116
    %v981 = vpop.f32.mrb[0].mxu0
    %v982 = vadd.f32 0.0, %v981
    %v983 = vpop.f32.mrb[0].mxu0
    %984 = vmatprep.mubr.f32.mxu0 0.0
    %985 = vmatmul.mubr.f32.gmra.mrb[0].mxu0 %v117
    %v986 = vpop.f32.mrb[0].mxu0
    %v987 = vadd.f32 0.0, %v986
    %v988 = vpop.f32.mrb[0].mxu0
    %989 = vmatprep.mubr.f32.mxu0 0.0
    %990 = vmatmul.mubr.f32.gmra.mrb[0].mxu0 %v118
    %v991 = vpop.f32.mrb[0].mxu0
    %v992 = vadd.f32 0.0, %v991
    %v993 = vpop.f32.mrb[0].mxu0
    %994 = vmatprep.mubr.f32.mxu0 0.0
    %995 = vmatmul.mubr.f32.gmra.mrb[0].mxu0 %v119
    %v996 = vpop.f32.mrb[0].mxu0
    %v997 = vadd.f32 0.0, %v996
    %v998 = vpop.f32.mrb[0].mxu0
    %999 = vmatprep.mubr.f32.mxu0 0.0
    %1000 = vmatmul.mubr.f32.gmra.mrb[0].mxu0 %v120
    %v1001 = vpop.f32.mrb[0].mxu0
    %v1002 = vadd.f32 0.0, %v1001
    %v1003 = vpop.f32.mrb[0].mxu0
    %1004 = vdwg.mxu0
    %v1005 = vmax.f32 %v927, 0.0
    %v1006 = vmax.f32 %v932, 0.0
    %v1007 = vmax.f32 %v937, 0.0
    %v1008 = vmax.f32 %v942, 0.0
    %v1009 = vmax.f32 %v947, 0.0
    %v1010 = vmax.f32 %v952, 0.0
    %v1011 = vmax.f32 %v957, 0.0
    %v1012 = vmax.f32 %v962, 0.0
    %v1013 = vmax.f32 %v967, 0.0
    %v1014 = vmax.f32 %v972, 0.0
    %v1015 = vmax.f32 %v977, 0.0
    %v1016 = vmax.f32 %v982, 0.0
    %v1017 = vmax.f32 %v987, 0.0
    %v1018 = vmax.f32 %v992, 0.0
    %v1019 = vmax.f32 %v997, 0.0
    %v1020 = vmax.f32 %v1002, 0.0
    %v1021 = vmul.f32 %v1005, %v121
    %v1022 = vmul.f32 %v1005, %v122
    %v1023 = vmul.f32 %v1005, %v123
    %v1024 = vmul.f32 %v1005, %v124
    %v1025 = vmul.f32 %v1005, %v125
    %v1026 = vmul.f32 %v1005, %v126
    %v1027 = vmul.f32 %v1006, %v127
    %v1028 = vmul.f32 %v1006, %v128
    %v1029 = vmul.f32 %v1006, %v129
    %v1030 = vmul.f32 %v1006, %v130
    %v1031 = vmul.f32 %v1006, %v131
    %v1032 = vmul.f32 %v1006, %v132
    %v1033 = vmul.f32 %v1007, %v133
    %v1034 = vmul.f32 %v1007, %v134
    %v1035 = vmul.f32 %v1007, %v135
    %v1036 = vmul.f32 %v1007, %v136
    %v1037 = vmul.f32 %v1007, %v137
    %v1038 = vmul.f32 %v1007, %v138
    %v1039 = vmul.f32 %v1008, %v139
    %v1040 = vmul.f32 %v1008, %v140
    %v1041 = vmul.f32 %v1008, %v141
    %v1042 = vmul.f32 %v1008, %v142
    %v1043 = vmul.f32 %v1008, %v143
    %v1044 = vmul.f32 %v1008, %v144
    %v1045 = vmul.f32 %v1009, %v145
    %v1046 = vmul.f32 %v1009, %v146
    %v1047 = vmul.f32 %v1009, %v147
    %v1048 = vmul.f32 %v1009, %v148
    %v1049 = vmul.f32 %v1009, %v149
    %v1050 = vmul.f32 %v1009, %v150
    %v1051 = vmul.f32 %v1010, %v151
    %v1052 = vmul.f32 %v1010, %v152
    %v1053 = vmul.f32 %v1010, %v153
    %v1054 = vmul.f32 %v1010, %v154
    %v1055 = vmul.f32 %v1010, %v155
    %v1056 = vmul.f32 %v1010, %v156
    %v1057 = vmul.f32 %v1011, %v157
    %v1058 = vmul.f32 %v1011, %v158
    %v1059 = vmul.f32 %v1011, %v159
    %v1060 = vmul.f32 %v1011, %v160
    %v1061 = vmul.f32 %v1011, %v161
    %v1062 = vmul.f32 %v1011, %v162
    %v1063 = vmul.f32 %v1012, %v163
    %v1064 = vmul.f32 %v1012, %v164
    %v1065 = vmul.f32 %v1012, %v165
    %v1066 = vmul.f32 %v1012, %v166
    %v1067 = vmul.f32 %v1012, %v167
    %v1068 = vmul.f32 %v1012, %v168
    %v1069 = vmul.f32 %v1013, %v169
    %v1070 = vmul.f32 %v1013, %v170
    %v1071 = vmul.f32 %v1013, %v171
    %v1072 = vmul.f32 %v1013, %v172
    %v1073 = vmul.f32 %v1013, %v173
    %v1074 = vmul.f32 %v1013, %v174
    %v1075 = vmul.f32 %v1014, %v175
    %v1076 = vmul.f32 %v1014, %v176
    %v1077 = vmul.f32 %v1014, %v177
    %v1078 = vmul.f32 %v1014, %v178
    %v1079 = vmul.f32 %v1014, %v179
    %v1080 = vmul.f32 %v1014, %v180
    %v1081 = vmul.f32 %v1015, %v181
    %v1082 = vmul.f32 %v1015, %v182
    %v1083 = vmul.f32 %v1015, %v183
    %v1084 = vmul.f32 %v1015, %v184
    %v1085 = vmul.f32 %v1015, %v185
    %v1086 = vmul.f32 %v1015, %v186
    %v1087 = vmul.f32 %v1016, %v187
    %v1088 = vmul.f32 %v1016, %v188
    %v1089 = vmul.f32 %v1016, %v189
    %v1090 = vmul.f32 %v1016, %v190
    %v1091 = vmul.f32 %v1016, %v191
    %v1092 = vmul.f32 %v1016, %v192
    %v1093 = vmul.f32 %v1017, %v193
    %v1094 = vmul.f32 %v1017, %v194
    %v1095 = vmul.f32 %v1017, %v195
    %v1096 = vmul.f32 %v1017, %v196
    %v1097 = vmul.f32 %v1017, %v197
    %v1098 = vmul.f32 %v1017, %v198
    %v1099 = vmul.f32 %v1018, %v199
    %v1100 = vmul.f32 %v1018, %v200
    %v1101 = vmul.f32 %v1018, %v201
    %v1102 = vmul.f32 %v1018, %v202
    %v1103 = vmul.f32 %v1018, %v203
    %v1104 = vmul.f32 %v1018, %v204
    %v1105 = vmul.f32 %v1019, %v205
    %v1106 = vmul.f32 %v1019, %v206
    %v1107 = vmul.f32 %v1019, %v207
    %v1108 = vmul.f32 %v1019, %v208
    %v1109 = vmul.f32 %v1019, %v209
    %v1110 = vmul.f32 %v1019, %v210
    %v1111 = vmul.f32 %v1020, %v211
    %v1112 = vmul.f32 %v1020, %v212
    %v1113 = vmul.f32 %v1020, %v213
    %v1114 = vmul.f32 %v1020, %v214
    %v1115 = vmul.f32 %v1020, %v215
    %v1116 = vmul.f32 %v1020, %v216
    %s1117 = scalar_lea.vmem [#allocation8], 768
    %v1118 = vld [vmem:[%s1117] sm:$0xff]
    %v1119 = vld [vmem:[%s1117 + $0x8] sm:$0xff]
    %v1120 = vld [vmem:[%s1117 + $0x10] sm:$0xff]
    %v1121 = vld [vmem:[%s1117 + $0x18] sm:$0xff]
    %v1122 = vld [vmem:[%s1117 + $0x20] sm:$0xff]
    %v1123 = vld [vmem:[%s1117 + $0x28] sm:$0xff]
    %v1124 = vld [vmem:[%s1117 + $0x30] sm:$0xff]
    %v1125 = vld [vmem:[%s1117 + $0x38] sm:$0xff]
    %v1126 = vld [vmem:[%s1117 + $0x40] sm:$0xff]
    %v1127 = vld [vmem:[%s1117 + $0x48] sm:$0xff]
    %v1128 = vld [vmem:[%s1117 + $0x50] sm:$0xff]
    %v1129 = vld [vmem:[%s1117 + $0x58] sm:$0xff]
    %v1130 = vld [vmem:[%s1117 + $0x60] sm:$0xff]
    %v1131 = vld [vmem:[%s1117 + $0x68] sm:$0xff]
    %v1132 = vld [vmem:[%s1117 + $0x70] sm:$0xff]
    %v1133 = vld [vmem:[%s1117 + $0x78] sm:$0xff]
    %v1134 = vld [vmem:[%s1117 + $0x80] sm:$0xff]
    %v1135 = vld [vmem:[%s1117 + $0x88] sm:$0xff]
    %v1136 = vld [vmem:[%s1117 + $0x90] sm:$0xff]
    %v1137 = vld [vmem:[%s1117 + $0x98] sm:$0xff]
    %v1138 = vld [vmem:[%s1117 + $0xa0] sm:$0xff]
    %v1139 = vld [vmem:[%s1117 + $0xa8] sm:$0xff]
    %v1140 = vld [vmem:[%s1117 + $0xb0] sm:$0xff]
    %v1141 = vld [vmem:[%s1117 + $0xb8] sm:$0xff]
    %v1142 = vld [vmem:[%s1117 + $0xc0] sm:$0xff]
    %v1143 = vld [vmem:[%s1117 + $0xc8] sm:$0xff]
    %v1144 = vld [vmem:[%s1117 + $0xd0] sm:$0xff]
    %v1145 = vld [vmem:[%s1117 + $0xd8] sm:$0xff]
    %v1146 = vld [vmem:[%s1117 + $0xe0] sm:$0xff]
    %v1147 = vld [vmem:[%s1117 + $0xe8] sm:$0xff]
    %v1148 = vld [vmem:[%s1117 + $0xf0] sm:$0xff]
    %v1149 = vld [vmem:[%s1117 + $0xf8] sm:$0xff]
    %v1150 = vld [vmem:[%s1117 + $0x100] sm:$0xff]
    %v1151 = vld [vmem:[%s1117 + $0x108] sm:$0xff]
    %v1152 = vld [vmem:[%s1117 + $0x110] sm:$0xff]
    %v1153 = vld [vmem:[%s1117 + $0x118] sm:$0xff]
    %v1154 = vld [vmem:[%s1117 + $0x120] sm:$0xff]
    %v1155 = vld [vmem:[%s1117 + $0x128] sm:$0xff]
    %v1156 = vld [vmem:[%s1117 + $0x130] sm:$0xff]
    %v1157 = vld [vmem:[%s1117 + $0x138] sm:$0xff]
    %v1158 = vld [vmem:[%s1117 + $0x140] sm:$0xff]
    %v1159 = vld [vmem:[%s1117 + $0x148] sm:$0xff]
    %v1160 = vld [vmem:[%s1117 + $0x150] sm:$0xff]
    %v1161 = vld [vmem:[%s1117 + $0x158] sm:$0xff]
    %v1162 = vld [vmem:[%s1117 + $0x160] sm:$0xff]
    %v1163 = vld [vmem:[%s1117 + $0x168] sm:$0xff]
    %v1164 = vld [vmem:[%s1117 + $0x170] sm:$0xff]
    %v1165 = vld [vmem:[%s1117 + $0x178] sm:$0xff]
    %v1166 = vld [vmem:[%s1117 + $0x180] sm:$0xff]
    %v1167 = vld [vmem:[%s1117 + $0x188] sm:$0xff]
    %v1168 = vld [vmem:[%s1117 + $0x190] sm:$0xff]
    %v1169 = vld [vmem:[%s1117 + $0x198] sm:$0xff]
    %v1170 = vld [vmem:[%s1117 + $0x1a0] sm:$0xff]
    %v1171 = vld [vmem:[%s1117 + $0x1a8] sm:$0xff]
    %v1172 = vld [vmem:[%s1117 + $0x1b0] sm:$0xff]
    %v1173 = vld [vmem:[%s1117 + $0x1b8] sm:$0xff]
    %v1174 = vld [vmem:[%s1117 + $0x1c0] sm:$0xff]
    %v1175 = vld [vmem:[%s1117 + $0x1c8] sm:$0xff]
    %v1176 = vld [vmem:[%s1117 + $0x1d0] sm:$0xff]
    %v1177 = vld [vmem:[%s1117 + $0x1d8] sm:$0xff]
    %v1178 = vld [vmem:[%s1117 + $0x1e0] sm:$0xff]
    %v1179 = vld [vmem:[%s1117 + $0x1e8] sm:$0xff]
    %v1180 = vld [vmem:[%s1117 + $0x1f0] sm:$0xff]
    %v1181 = vld [vmem:[%s1117 + $0x1f8] sm:$0xff]
    %v1182 = vld [vmem:[%s1117 + $0x200] sm:$0xff]
    %v1183 = vld [vmem:[%s1117 + $0x208] sm:$0xff]
    %v1184 = vld [vmem:[%s1117 + $0x210] sm:$0xff]
    %v1185 = vld [vmem:[%s1117 + $0x218] sm:$0xff]
    %v1186 = vld [vmem:[%s1117 + $0x220] sm:$0xff]
    %v1187 = vld [vmem:[%s1117 + $0x228] sm:$0xff]
    %v1188 = vld [vmem:[%s1117 + $0x230] sm:$0xff]
    %v1189 = vld [vmem:[%s1117 + $0x238] sm:$0xff]
    %v1190 = vld [vmem:[%s1117 + $0x240] sm:$0xff]
    %v1191 = vld [vmem:[%s1117 + $0x248] sm:$0xff]
    %v1192 = vld [vmem:[%s1117 + $0x250] sm:$0xff]
    %v1193 = vld [vmem:[%s1117 + $0x258] sm:$0xff]
    %v1194 = vld [vmem:[%s1117 + $0x260] sm:$0xff]
    %v1195 = vld [vmem:[%s1117 + $0x268] sm:$0xff]
    %v1196 = vld [vmem:[%s1117 + $0x270] sm:$0xff]
    %v1197 = vld [vmem:[%s1117 + $0x278] sm:$0xff]
    %v1198 = vld [vmem:[%s1117 + $0x280] sm:$0xff]
    %v1199 = vld [vmem:[%s1117 + $0x288] sm:$0xff]
    %v1200 = vld [vmem:[%s1117 + $0x290] sm:$0xff]
    %v1201 = vld [vmem:[%s1117 + $0x298] sm:$0xff]
    %v1202 = vld [vmem:[%s1117 + $0x2a0] sm:$0xff]
    %v1203 = vld [vmem:[%s1117 + $0x2a8] sm:$0xff]
    %v1204 = vld [vmem:[%s1117 + $0x2b0] sm:$0xff]
    %v1205 = vld [vmem:[%s1117 + $0x2b8] sm:$0xff]
    %v1206 = vld [vmem:[%s1117 + $0x2c0] sm:$0xff]
    %v1207 = vld [vmem:[%s1117 + $0x2c8] sm:$0xff]
    %v1208 = vld [vmem:[%s1117 + $0x2d0] sm:$0xff]
    %v1209 = vld [vmem:[%s1117 + $0x2d8] sm:$0xff]
    %v1210 = vld [vmem:[%s1117 + $0x2e0] sm:$0xff]
    %v1211 = vld [vmem:[%s1117 + $0x2e8] sm:$0xff]
    %v1212 = vld [vmem:[%s1117 + $0x2f0] sm:$0xff]
    %v1213 = vld [vmem:[%s1117 + $0x2f8] sm:$0xff]
    %s1214 = scalar_lea.vmem [#allocation10], 128
    %v1215 = vld [vmem:[%s1214] sm:$0xff]
    %v1216 = vld [vmem:[%s1214 + $0x8] sm:$0xff]
    %v1217 = vld [vmem:[%s1214 + $0x10] sm:$0xff]
    %v1218 = vld [vmem:[%s1214 + $0x18] sm:$0xff]
    %v1219 = vld [vmem:[%s1214 + $0x20] sm:$0xff]
    %v1220 = vld [vmem:[%s1214 + $0x28] sm:$0xff]
    %v1221 = vld [vmem:[%s1214 + $0x30] sm:$0xff]
    %v1222 = vld [vmem:[%s1214 + $0x38] sm:$0xff]
    %v1223 = vld [vmem:[%s1214 + $0x40] sm:$0xff]
    %v1224 = vld [vmem:[%s1214 + $0x48] sm:$0xff]
    %v1225 = vld [vmem:[%s1214 + $0x50] sm:$0xff]
    %v1226 = vld [vmem:[%s1214 + $0x58] sm:$0xff]
    %v1227 = vld [vmem:[%s1214 + $0x60] sm:$0xff]
    %v1228 = vld [vmem:[%s1214 + $0x68] sm:$0xff]
    %v1229 = vld [vmem:[%s1214 + $0x70] sm:$0xff]
    %v1230 = vld [vmem:[%s1214 + $0x78] sm:$0xff]
    %1231 = vmatprep.subr.mxu0 0.0
    %1232 = vmatpush1.msra.mxu0 %v1118
    %1233 = vmatprep.subr.mxu0 0.0
    %1234 = vmatpush1.msra.mxu0 %v1119
    %1235 = vmatprep.subr.mxu0 0.0
    %1236 = vmatpush1.msra.mxu0 %v1120
    %1237 = vmatprep.subr.mxu0 0.0
    %1238 = vmatpush1.msra.mxu0 %v1121
    %1239 = vmatprep.subr.mxu0 0.0
    %1240 = vmatpush1.msra.mxu0 %v1122
    %1241 = vmatprep.subr.mxu0 0.0
    %1242 = vmatpush1.msra.mxu0 %v1123
    %1243 = vmatprep.subr.mxu0 0.0
    %1244 = vmatpush1.msra.mxu0 %v1124
    %1245 = vmatprep.subr.mxu0 0.0
    %1246 = vmatpush1.msra.mxu0 %v1125
    %1247 = vmatprep.subr.mxu0 0.0
    %1248 = vmatpush1.msra.mxu0 %v1126
    %1249 = vmatprep.subr.mxu0 0.0
    %1250 = vmatpush1.msra.mxu0 %v1127
    %1251 = vmatprep.subr.mxu0 0.0
    %1252 = vmatpush1.msra.mxu0 %v1128
    %1253 = vmatprep.subr.mxu0 0.0
    %1254 = vmatpush1.msra.mxu0 %v1129
    %1255 = vmatprep.subr.mxu0 0.0
    %1256 = vmatpush1.msra.mxu0 %v1130
    %1257 = vmatprep.subr.mxu0 0.0
    %1258 = vmatpush1.msra.mxu0 %v1131
    %1259 = vmatprep.subr.mxu0 0.0
    %1260 = vmatpush1.msra.mxu0 %v1132
    %1261 = vmatprep.subr.mxu0 0.0
    %1262 = vmatpush1.msra.mxu0 %v1133
    %1263 = vmatprep.subr.mxu0 0.0
    %1264 = vmatpush1.msra.mxu0 %v1134
    %1265 = vmatprep.subr.mxu0 0.0
    %1266 = vmatpush1.msra.mxu0 %v1135
    %1267 = vmatprep.subr.mxu0 0.0
    %1268 = vmatpush1.msra.mxu0 %v1136
    %1269 = vmatprep.subr.mxu0 0.0
    %1270 = vmatpush1.msra.mxu0 %v1137
    %1271 = vmatprep.subr.mxu0 0.0
    %1272 = vmatpush1.msra.mxu0 %v1138
    %1273 = vmatprep.subr.mxu0 0.0
    %1274 = vmatpush1.msra.mxu0 %v1139
    %1275 = vmatprep.subr.mxu0 0.0
    %1276 = vmatpush1.msra.mxu0 %v1140
    %1277 = vmatprep.subr.mxu0 0.0
    %1278 = vmatpush1.msra.mxu0 %v1141
    %1279 = vmatprep.subr.mxu0 0.0
    %1280 = vmatpush1.msra.mxu0 %v1142
    %1281 = vmatprep.subr.mxu0 0.0
    %1282 = vmatpush1.msra.mxu0 %v1143
    %1283 = vmatprep.subr.mxu0 0.0
    %1284 = vmatpush1.msra.mxu0 %v1144
    %1285 = vmatprep.subr.mxu0 0.0
    %1286 = vmatpush1.msra.mxu0 %v1145
    %1287 = vmatprep.subr.mxu0 0.0
    %1288 = vmatpush1.msra.mxu0 %v1146
    %1289 = vmatprep.subr.mxu0 0.0
    %1290 = vmatpush1.msra.mxu0 %v1147
    %1291 = vmatprep.subr.mxu0 0.0
    %1292 = vmatpush1.msra.mxu0 %v1148
    %1293 = vmatprep.subr.mxu0 0.0
    %1294 = vmatpush1.msra.mxu0 %v1149
    %1295 = vmatprep.mubr.f32.mxu0 %v1022
    %1296 = vmatmul.mubr.f32.gmra.mrb[0].mxu0 %v1021
    %v1297 = vpop.f32.mrb[0].mxu0
    %v1298 = vadd.f32 %v1215, %v1297
    %v1299 = vpop.f32.mrb[0].mxu0
    %1300 = vmatprep.mubr.f32.mxu0 %v1028
    %1301 = vmatmul.mubr.f32.gmra.mrb[0].mxu0 %v1027
    %v1302 = vpop.f32.mrb[0].mxu0
    %v1303 = vadd.f32 %v1216, %v1302
    %v1304 = vpop.f32.mrb[0].mxu0
    %1305 = vmatprep.mubr.f32.mxu0 %v1034
    %1306 = vmatmul.mubr.f32.gmra.mrb[0].mxu0 %v1033
    %v1307 = vpop.f32.mrb[0].mxu0
    %v1308 = vadd.f32 %v1217, %v1307
    %v1309 = vpop.f32.mrb[0].mxu0
    %1310 = vmatprep.mubr.f32.mxu0 %v1040
    %1311 = vmatmul.mubr.f32.gmra.mrb[0].mxu0 %v1039
    %v1312 = vpop.f32.mrb[0].mxu0
    %v1313 = vadd.f32 %v1218, %v1312
    %v1314 = vpop.f32.mrb[0].mxu0
    %1315 = vmatprep.mubr.f32.mxu0 %v1046
    %1316 = vmatmul.mubr.f32.gmra.mrb[0].mxu0 %v1045
    %v1317 = vpop.f32.mrb[0].mxu0
    %v1318 = vadd.f32 %v1219, %v1317
    %v1319 = vpop.f32.mrb[0].mxu0
    %1320 = vmatprep.mubr.f32.mxu0 %v1052
    %1321 = vmatmul.mubr.f32.gmra.mrb[0].mxu0 %v1051
    %v1322 = vpop.f32.mrb[0].mxu0
    %v1323 = vadd.f32 %v1220, %v1322
    %v1324 = vpop.f32.mrb[0].mxu0
    %1325 = vmatprep.mubr.f32.mxu0 %v1058
    %1326 = vmatmul.mubr.f32.gmra.mrb[0].mxu0 %v1057
    %v1327 = vpop.f32.mrb[0].mxu0
    %v1328 = vadd.f32 %v1221, %v1327
    %v1329 = vpop.f32.mrb[0].mxu0
    %1330 = vmatprep.mubr.f32.mxu0 %v1064
    %1331 = vmatmul.mubr.f32.gmra.mrb[0].mxu0 %v1063
    %v1332 = vpop.f32.mrb[0].mxu0
    %v1333 = vadd.f32 %v1222, %v1332
    %v1334 = vpop.f32.mrb[0].mxu0
    %1335 = vmatprep.mubr.f32.mxu0 %v1070
    %1336 = vmatmul.mubr.f32.gmra.mrb[0].mxu0 %v1069
    %v1337 = vpop.f32.mrb[0].mxu0
    %v1338 = vadd.f32 %v1223, %v1337
    %v1339 = vpop.f32.mrb[0].mxu0
    %1340 = vmatprep.mubr.f32.mxu0 %v1076
    %1341 = vmatmul.mubr.f32.gmra.mrb[0].mxu0 %v1075
    %v1342 = vpop.f32.mrb[0].mxu0
    %v1343 = vadd.f32 %v1224, %v1342
    %v1344 = vpop.f32.mrb[0].mxu0
    %1345 = vmatprep.mubr.f32.mxu0 %v1082
    %1346 = vmatmul.mubr.f32.gmra.mrb[0].mxu0 %v1081
    %v1347 = vpop.f32.mrb[0].mxu0
    %v1348 = vadd.f32 %v1225, %v1347
    %v1349 = vpop.f32.mrb[0].mxu0
    %1350 = vmatprep.mubr.f32.mxu0 %v1088
    %1351 = vmatmul.mubr.f32.gmra.mrb[0].mxu0 %v1087
    %v1352 = vpop.f32.mrb[0].mxu0
    %v1353 = vadd.f32 %v1226, %v1352
    %v1354 = vpop.f32.mrb[0].mxu0
    %1355 = vmatprep.mubr.f32.mxu0 %v1094
    %1356 = vmatmul.mubr.f32.gmra.mrb[0].mxu0 %v1093
    %v1357 = vpop.f32.mrb[0].mxu0
    %v1358 = vadd.f32 %v1227, %v1357
    %v1359 = vpop.f32.mrb[0].mxu0
    %1360 = vmatprep.mubr.f32.mxu0 %v1100
    %1361 = vmatmul.mubr.f32.gmra.mrb[0].mxu0 %v1099
    %v1362 = vpop.f32.mrb[0].mxu0
    %v1363 = vadd.f32 %v1228, %v1362
    %v1364 = vpop.f32.mrb[0].mxu0
    %1365 = vmatprep.mubr.f32.mxu0 %v1106
    %1366 = vmatmul.mubr.f32.gmra.mrb[0].mxu0 %v1105
    %v1367 = vpop.f32.mrb[0].mxu0
    %v1368 = vadd.f32 %v1229, %v1367
    %v1369 = vpop.f32.mrb[0].mxu0
    %1370 = vmatprep.mubr.f32.mxu0 %v1112
    %1371 = vmatmul.mubr.f32.gmra.mrb[0].mxu0 %v1111
    %v1372 = vpop.f32.mrb[0].mxu0
    %v1373 = vadd.f32 %v1230, %v1372
    %v1374 = vpop.f32.mrb[0].mxu0
    %1375 = vdwg.mxu0
    %1376 = vmatprep.subr.mxu0 0.0
    %1377 = vmatpush1.msra.mxu0 %v1150
    %1378 = vmatprep.subr.mxu0 0.0
    %1379 = vmatpush1.msra.mxu0 %v1151
    %1380 = vmatprep.subr.mxu0 0.0
    %1381 = vmatpush1.msra.mxu0 %v1152
    %1382 = vmatprep.subr.mxu0 0.0
    %1383 = vmatpush1.msra.mxu0 %v1153
    %1384 = vmatprep.subr.mxu0 0.0
    %1385 = vmatpush1.msra.mxu0 %v1154
    %1386 = vmatprep.subr.mxu0 0.0
    %1387 = vmatpush1.msra.mxu0 %v1155
    %1388 = vmatprep.subr.mxu0 0.0
    %1389 = vmatpush1.msra.mxu0 %v1156
    %1390 = vmatprep.subr.mxu0 0.0
    %1391 = vmatpush1.msra.mxu0 %v1157
    %1392 = vmatprep.subr.mxu0 0.0
    %1393 = vmatpush1.msra.mxu0 %v1158
    %1394 = vmatprep.subr.mxu0 0.0
    %1395 = vmatpush1.msra.mxu0 %v1159
    %1396 = vmatprep.subr.mxu0 0.0
    %1397 = vmatpush1.msra.mxu0 %v1160
    %1398 = vmatprep.subr.mxu0 0.0
    %1399 = vmatpush1.msra.mxu0 %v1161
    %1400 = vmatprep.subr.mxu0 0.0
    %1401 = vmatpush1.msra.mxu0 %v1162
    %1402 = vmatprep.subr.mxu0 0.0
    %1403 = vmatpush1.msra.mxu0 %v1163
    %1404 = vmatprep.subr.mxu0 0.0
    %1405 = vmatpush1.msra.mxu0 %v1164
    %1406 = vmatprep.subr.mxu0 0.0
    %1407 = vmatpush1.msra.mxu0 %v1165
    %1408 = vmatprep.subr.mxu0 0.0
    %1409 = vmatpush1.msra.mxu0 %v1166
    %1410 = vmatprep.subr.mxu0 0.0
    %1411 = vmatpush1.msra.mxu0 %v1167
    %1412 = vmatprep.subr.mxu0 0.0
    %1413 = vmatpush1.msra.mxu0 %v1168
    %1414 = vmatprep.subr.mxu0 0.0
    %1415 = vmatpush1.msra.mxu0 %v1169
    %1416 = vmatprep.subr.mxu0 0.0
    %1417 = vmatpush1.msra.mxu0 %v1170
    %1418 = vmatprep.subr.mxu0 0.0
    %1419 = vmatpush1.msra.mxu0 %v1171
    %1420 = vmatprep.subr.mxu0 0.0
    %1421 = vmatpush1.msra.mxu0 %v1172
    %1422 = vmatprep.subr.mxu0 0.0
    %1423 = vmatpush1.msra.mxu0 %v1173
    %1424 = vmatprep.subr.mxu0 0.0
    %1425 = vmatpush1.msra.mxu0 %v1174
    %1426 = vmatprep.subr.mxu0 0.0
    %1427 = vmatpush1.msra.mxu0 %v1175
    %1428 = vmatprep.subr.mxu0 0.0
    %1429 = vmatpush1.msra.mxu0 %v1176
    %1430 = vmatprep.subr.mxu0 0.0
    %1431 = vmatpush1.msra.mxu0 %v1177
    %1432 = vmatprep.subr.mxu0 0.0
    %1433 = vmatpush1.msra.mxu0 %v1178
    %1434 = vmatprep.subr.mxu0 0.0
    %1435 = vmatpush1.msra.mxu0 %v1179
    %1436 = vmatprep.subr.mxu0 0.0
    %1437 = vmatpush1.msra.mxu0 %v1180
    %1438 = vmatprep.subr.mxu0 0.0
    %1439 = vmatpush1.msra.mxu0 %v1181
    %1440 = vmatprep.mubr.f32.mxu0 %v1024
    %1441 = vmatmul.mubr.f32.gmra.mrb[0].mxu0 %v1023
    %v1442 = vpop.f32.mrb[0].mxu0
    %v1443 = vadd.f32 %v1298, %v1442
    %v1444 = vpop.f32.mrb[0].mxu0
    %1445 = vmatprep.mubr.f32.mxu0 %v1030
    %1446 = vmatmul.mubr.f32.gmra.mrb[0].mxu0 %v1029
    %v1447 = vpop.f32.mrb[0].mxu0
    %v1448 = vadd.f32 %v1303, %v1447
    %v1449 = vpop.f32.mrb[0].mxu0
    %1450 = vmatprep.mubr.f32.mxu0 %v1036
    %1451 = vmatmul.mubr.f32.gmra.mrb[0].mxu0 %v1035
    %v1452 = vpop.f32.mrb[0].mxu0
    %v1453 = vadd.f32 %v1308, %v1452
    %v1454 = vpop.f32.mrb[0].mxu0
    %1455 = vmatprep.mubr.f32.mxu0 %v1042
    %1456 = vmatmul.mubr.f32.gmra.mrb[0].mxu0 %v1041
    %v1457 = vpop.f32.mrb[0].mxu0
    %v1458 = vadd.f32 %v1313, %v1457
    %v1459 = vpop.f32.mrb[0].mxu0
    %1460 = vmatprep.mubr.f32.mxu0 %v1048
    %1461 = vmatmul.mubr.f32.gmra.mrb[0].mxu0 %v1047
    %v1462 = vpop.f32.mrb[0].mxu0
    %v1463 = vadd.f32 %v1318, %v1462
    %v1464 = vpop.f32.mrb[0].mxu0
    %1465 = vmatprep.mubr.f32.mxu0 %v1054
    %1466 = vmatmul.mubr.f32.gmra.mrb[0].mxu0 %v1053
    %v1467 = vpop.f32.mrb[0].mxu0
    %v1468 = vadd.f32 %v1323, %v1467
    %v1469 = vpop.f32.mrb[0].mxu0
    %1470 = vmatprep.mubr.f32.mxu0 %v1060
    %1471 = vmatmul.mubr.f32.gmra.mrb[0].mxu0 %v1059
    %v1472 = vpop.f32.mrb[0].mxu0
    %v1473 = vadd.f32 %v1328, %v1472
    %v1474 = vpop.f32.mrb[0].mxu0
    %1475 = vmatprep.mubr.f32.mxu0 %v1066
    %1476 = vmatmul.mubr.f32.gmra.mrb[0].mxu0 %v1065
    %v1477 = vpop.f32.mrb[0].mxu0
    %v1478 = vadd.f32 %v1333, %v1477
    %v1479 = vpop.f32.mrb[0].mxu0
    %1480 = vmatprep.mubr.f32.mxu0 %v1072
    %1481 = vmatmul.mubr.f32.gmra.mrb[0].mxu0 %v1071
    %v1482 = vpop.f32.mrb[0].mxu0
    %v1483 = vadd.f32 %v1338, %v1482
    %v1484 = vpop.f32.mrb[0].mxu0
    %1485 = vmatprep.mubr.f32.mxu0 %v1078
    %1486 = vmatmul.mubr.f32.gmra.mrb[0].mxu0 %v1077
    %v1487 = vpop.f32.mrb[0].mxu0
    %v1488 = vadd.f32 %v1343, %v1487
    %v1489 = vpop.f32.mrb[0].mxu0
    %1490 = vmatprep.mubr.f32.mxu0 %v1084
    %1491 = vmatmul.mubr.f32.gmra.mrb[0].mxu0 %v1083
    %v1492 = vpop.f32.mrb[0].mxu0
    %v1493 = vadd.f32 %v1348, %v1492
    %v1494 = vpop.f32.mrb[0].mxu0
    %1495 = vmatprep.mubr.f32.mxu0 %v1090
    %1496 = vmatmul.mubr.f32.gmra.mrb[0].mxu0 %v1089
    %v1497 = vpop.f32.mrb[0].mxu0
    %v1498 = vadd.f32 %v1353, %v1497
    %v1499 = vpop.f32.mrb[0].mxu0
    %1500 = vmatprep.mubr.f32.mxu0 %v1096
    %1501 = vmatmul.mubr.f32.gmra.mrb[0].mxu0 %v1095
    %v1502 = vpop.f32.mrb[0].mxu0
    %v1503 = vadd.f32 %v1358, %v1502
    %v1504 = vpop.f32.mrb[0].mxu0
    %1505 = vmatprep.mubr.f32.mxu0 %v1102
    %1506 = vmatmul.mubr.f32.gmra.mrb[0].mxu0 %v1101
    %v1507 = vpop.f32.mrb[0].mxu0
    %v1508 = vadd.f32 %v1363, %v1507
    %v1509 = vpop.f32.mrb[0].mxu0
    %1510 = vmatprep.mubr.f32.mxu0 %v1108
    %1511 = vmatmul.mubr.f32.gmra.mrb[0].mxu0 %v1107
    %v1512 = vpop.f32.mrb[0].mxu0
    %v1513 = vadd.f32 %v1368, %v1512
    %v1514 = vpop.f32.mrb[0].mxu0
    %1515 = vmatprep.mubr.f32.mxu0 %v1114
    %1516 = vmatmul.mubr.f32.gmra.mrb[0].mxu0 %v1113
    %v1517 = vpop.f32.mrb[0].mxu0
    %v1518 = vadd.f32 %v1373, %v1517
    %v1519 = vpop.f32.mrb[0].mxu0
    %1520 = vdwg.mxu0
    %1521 = vmatprep.subr.mxu0 0.0
    %1522 = vmatpush1.msra.mxu0 %v1182
    %1523 = vmatprep.subr.mxu0 0.0
    %1524 = vmatpush1.msra.mxu0 %v1183
    %1525 = vmatprep.subr.mxu0 0.0
    %1526 = vmatpush1.msra.mxu0 %v1184
    %1527 = vmatprep.subr.mxu0 0.0
    %1528 = vmatpush1.msra.mxu0 %v1185
    %1529 = vmatprep.subr.mxu0 0.0
    %1530 = vmatpush1.msra.mxu0 %v1186
    %1531 = vmatprep.subr.mxu0 0.0
    %1532 = vmatpush1.msra.mxu0 %v1187
    %1533 = vmatprep.subr.mxu0 0.0
    %1534 = vmatpush1.msra.mxu0 %v1188
    %1535 = vmatprep.subr.mxu0 0.0
    %1536 = vmatpush1.msra.mxu0 %v1189
    %1537 = vmatprep.subr.mxu0 0.0
    %1538 = vmatpush1.msra.mxu0 %v1190
    %1539 = vmatprep.subr.mxu0 0.0
    %1540 = vmatpush1.msra.mxu0 %v1191
    %1541 = vmatprep.subr.mxu0 0.0
    %1542 = vmatpush1.msra.mxu0 %v1192
    %1543 = vmatprep.subr.mxu0 0.0
    %1544 = vmatpush1.msra.mxu0 %v1193
    %1545 = vmatprep.subr.mxu0 0.0
    %1546 = vmatpush1.msra.mxu0 %v1194
    %1547 = vmatprep.subr.mxu0 0.0
    %1548 = vmatpush1.msra.mxu0 %v1195
    %1549 = vmatprep.subr.mxu0 0.0
    %1550 = vmatpush1.msra.mxu0 %v1196
    %1551 = vmatprep.subr.mxu0 0.0
    %1552 = vmatpush1.msra.mxu0 %v1197
    %1553 = vmatprep.subr.mxu0 0.0
    %1554 = vmatpush1.msra.mxu0 %v1198
    %1555 = vmatprep.subr.mxu0 0.0
    %1556 = vmatpush1.msra.mxu0 %v1199
    %1557 = vmatprep.subr.mxu0 0.0
    %1558 = vmatpush1.msra.mxu0 %v1200
    %1559 = vmatprep.subr.mxu0 0.0
    %1560 = vmatpush1.msra.mxu0 %v1201
    %1561 = vmatprep.subr.mxu0 0.0
    %1562 = vmatpush1.msra.mxu0 %v1202
    %1563 = vmatprep.subr.mxu0 0.0
    %1564 = vmatpush1.msra.mxu0 %v1203
    %1565 = vmatprep.subr.mxu0 0.0
    %1566 = vmatpush1.msra.mxu0 %v1204
    %1567 = vmatprep.subr.mxu0 0.0
    %1568 = vmatpush1.msra.mxu0 %v1205
    %1569 = vmatprep.subr.mxu0 0.0
    %1570 = vmatpush1.msra.mxu0 %v1206
    %1571 = vmatprep.subr.mxu0 0.0
    %1572 = vmatpush1.msra.mxu0 %v1207
    %1573 = vmatprep.subr.mxu0 0.0
    %1574 = vmatpush1.msra.mxu0 %v1208
    %1575 = vmatprep.subr.mxu0 0.0
    %1576 = vmatpush1.msra.mxu0 %v1209
    %1577 = vmatprep.subr.mxu0 0.0
    %1578 = vmatpush1.msra.mxu0 %v1210
    %1579 = vmatprep.subr.mxu0 0.0
    %1580 = vmatpush1.msra.mxu0 %v1211
    %1581 = vmatprep.subr.mxu0 0.0
    %1582 = vmatpush1.msra.mxu0 %v1212
    %1583 = vmatprep.subr.mxu0 0.0
    %1584 = vmatpush1.msra.mxu0 %v1213
    %1585 = vmatprep.mubr.f32.mxu0 %v1026
    %1586 = vmatmul.mubr.f32.gmra.mrb[0].mxu0 %v1025
    %v1587 = vpop.f32.mrb[0].mxu0
    %v1588 = vadd.f32 %v1443, %v1587
    %v1589 = vpop.f32.mrb[0].mxu0
    %1590 = vmatprep.mubr.f32.mxu0 %v1032
    %1591 = vmatmul.mubr.f32.gmra.mrb[0].mxu0 %v1031
    %v1592 = vpop.f32.mrb[0].mxu0
    %v1593 = vadd.f32 %v1448, %v1592
    %v1594 = vpop.f32.mrb[0].mxu0
    %1595 = vmatprep.mubr.f32.mxu0 %v1038
    %1596 = vmatmul.mubr.f32.gmra.mrb[0].mxu0 %v1037
    %v1597 = vpop.f32.mrb[0].mxu0
    %v1598 = vadd.f32 %v1453, %v1597
    %v1599 = vpop.f32.mrb[0].mxu0
    %1600 = vmatprep.mubr.f32.mxu0 %v1044
    %1601 = vmatmul.mubr.f32.gmra.mrb[0].mxu0 %v1043
    %v1602 = vpop.f32.mrb[0].mxu0
    %v1603 = vadd.f32 %v1458, %v1602
    %v1604 = vpop.f32.mrb[0].mxu0
    %1605 = vmatprep.mubr.f32.mxu0 %v1050
    %1606 = vmatmul.mubr.f32.gmra.mrb[0].mxu0 %v1049
    %v1607 = vpop.f32.mrb[0].mxu0
    %v1608 = vadd.f32 %v1463, %v1607
    %v1609 = vpop.f32.mrb[0].mxu0
    %1610 = vmatprep.mubr.f32.mxu0 %v1056
    %1611 = vmatmul.mubr.f32.gmra.mrb[0].mxu0 %v1055
    %v1612 = vpop.f32.mrb[0].mxu0
    %v1613 = vadd.f32 %v1468, %v1612
    %v1614 = vpop.f32.mrb[0].mxu0
    %1615 = vmatprep.mubr.f32.mxu0 %v1062
    %1616 = vmatmul.mubr.f32.gmra.mrb[0].mxu0 %v1061
    %v1617 = vpop.f32.mrb[0].mxu0
    %v1618 = vadd.f32 %v1473, %v1617
    %v1619 = vpop.f32.mrb[0].mxu0
    %1620 = vmatprep.mubr.f32.mxu0 %v1068
    %1621 = vmatmul.mubr.f32.gmra.mrb[0].mxu0 %v1067
    %v1622 = vpop.f32.mrb[0].mxu0
    %v1623 = vadd.f32 %v1478, %v1622
    %v1624 = vpop.f32.mrb[0].mxu0
    %1625 = vmatprep.mubr.f32.mxu0 %v1074
    %1626 = vmatmul.mubr.f32.gmra.mrb[0].mxu0 %v1073
    %v1627 = vpop.f32.mrb[0].mxu0
    %v1628 = vadd.f32 %v1483, %v1627
    %v1629 = vpop.f32.mrb[0].mxu0
    %1630 = vmatprep.mubr.f32.mxu0 %v1080
    %1631 = vmatmul.mubr.f32.gmra.mrb[0].mxu0 %v1079
    %v1632 = vpop.f32.mrb[0].mxu0
    %v1633 = vadd.f32 %v1488, %v1632
    %v1634 = vpop.f32.mrb[0].mxu0
    %1635 = vmatprep.mubr.f32.mxu0 %v1086
    %1636 = vmatmul.mubr.f32.gmra.mrb[0].mxu0 %v1085
    %v1637 = vpop.f32.mrb[0].mxu0
    %v1638 = vadd.f32 %v1493, %v1637
    %v1639 = vpop.f32.mrb[0].mxu0
    %1640 = vmatprep.mubr.f32.mxu0 %v1092
    %1641 = vmatmul.mubr.f32.gmra.mrb[0].mxu0 %v1091
    %v1642 = vpop.f32.mrb[0].mxu0
    %v1643 = vadd.f32 %v1498, %v1642
    %v1644 = vpop.f32.mrb[0].mxu0
    %1645 = vmatprep.mubr.f32.mxu0 %v1098
    %1646 = vmatmul.mubr.f32.gmra.mrb[0].mxu0 %v1097
    %v1647 = vpop.f32.mrb[0].mxu0
    %v1648 = vadd.f32 %v1503, %v1647
    %v1649 = vpop.f32.mrb[0].mxu0
    %1650 = vmatprep.mubr.f32.mxu0 %v1104
    %1651 = vmatmul.mubr.f32.gmra.mrb[0].mxu0 %v1103
    %v1652 = vpop.f32.mrb[0].mxu0
    %v1653 = vadd.f32 %v1508, %v1652
    %v1654 = vpop.f32.mrb[0].mxu0
    %1655 = vmatprep.mubr.f32.mxu0 %v1110
    %1656 = vmatmul.mubr.f32.gmra.mrb[0].mxu0 %v1109
    %v1657 = vpop.f32.mrb[0].mxu0
    %v1658 = vadd.f32 %v1513, %v1657
    %v1659 = vpop.f32.mrb[0].mxu0
    %1660 = vmatprep.mubr.f32.mxu0 %v1116
    %1661 = vmatmul.mubr.f32.gmra.mrb[0].mxu0 %v1115
    %v1662 = vpop.f32.mrb[0].mxu0
    %v1663 = vadd.f32 %v1518, %v1662
    %v1664 = vpop.f32.mrb[0].mxu0
    %1665 = vdwg.mxu0
    %1666 = vmatprep.subr.mxu0 0.0
    %1667 = vmatpush1.msra.mxu0 %v1588
    %1668 = vmatprep.subr.mxu0 0.0
    %1669 = vmatpush1.msra.mxu0 %v1593
    %1670 = vmatprep.subr.mxu0 0.0
    %1671 = vmatpush1.msra.mxu0 %v1598
    %1672 = vmatprep.subr.mxu0 0.0
    %1673 = vmatpush1.msra.mxu0 %v1603
    %1674 = vmatprep.subr.mxu0 0.0
    %1675 = vmatpush1.msra.mxu0 %v1608
    %1676 = vmatprep.subr.mxu0 0.0
    %1677 = vmatpush1.msra.mxu0 %v1613
    %1678 = vmatprep.subr.mxu0 0.0
    %1679 = vmatpush1.msra.mxu0 %v1618
    %1680 = vmatprep.subr.mxu0 0.0
    %1681 = vmatpush1.msra.mxu0 %v1623
    %1682 = vmatprep.subr.mxu0 0.0
    %1683 = vmatpush1.msra.mxu0 %v1628
    %1684 = vmatprep.subr.mxu0 0.0
    %1685 = vmatpush1.msra.mxu0 %v1633
    %1686 = vmatprep.subr.mxu0 0.0
    %1687 = vmatpush1.msra.mxu0 %v1638
    %1688 = vmatprep.subr.mxu0 0.0
    %1689 = vmatpush1.msra.mxu0 %v1643
    %1690 = vmatprep.subr.mxu0 0.0
    %1691 = vmatpush1.msra.mxu0 %v1648
    %1692 = vmatprep.subr.mxu0 0.0
    %1693 = vmatpush1.msra.mxu0 %v1653
    %1694 = vmatprep.subr.mxu0 0.0
    %1695 = vmatpush1.msra.mxu0 %v1658
    %1696 = vmatprep.subr.mxu0 0.0
    %1697 = vmatpush1.msra.mxu0 %v1663
    %1698 = vmatprep.subr.mxu0 0.0
    %1699 = vmatpush1.msra.mxu0 0.0
    %1700 = vmatprep.subr.mxu0 0.0
    %1701 = vmatpush1.msra.mxu0 0.0
    %1702 = vmatprep.subr.mxu0 0.0
    %1703 = vmatpush1.msra.mxu0 0.0
    %1704 = vmatprep.subr.mxu0 0.0
    %1705 = vmatpush1.msra.mxu0 0.0
    %1706 = vmatprep.subr.mxu0 0.0
    %1707 = vmatpush1.msra.mxu0 0.0
    %1708 = vmatprep.subr.mxu0 0.0
    %1709 = vmatpush1.msra.mxu0 0.0
    %1710 = vmatprep.subr.mxu0 0.0
    %1711 = vmatpush1.msra.mxu0 0.0
    %1712 = vmatprep.subr.mxu0 0.0
    %1713 = vmatpush1.msra.mxu0 0.0
    %1714 = vmatprep.subr.mxu0 0.0
    %1715 = vmatpush1.msra.mxu0 0.0
    %1716 = vmatprep.subr.mxu0 0.0
    %1717 = vmatpush1.msra.mxu0 0.0
    %1718 = vmatprep.subr.mxu0 0.0
    %1719 = vmatpush1.msra.mxu0 0.0
    %1720 = vmatprep.subr.mxu0 0.0
    %1721 = vmatpush1.msra.mxu0 0.0
    %1722 = vmatprep.subr.mxu0 0.0
    %1723 = vmatpush1.msra.mxu0 0.0
    %1724 = vmatprep.subr.mxu0 0.0
    %1725 = vmatpush1.msra.mxu0 0.0
    %1726 = vmatprep.subr.mxu0 0.0
    %1727 = vmatpush1.msra.mxu0 0.0
    %1728 = vmatprep.subr.mxu0 0.0
    %1729 = vmatpush1.msra.mxu0 0.0
    %1730 = vmatprep.mubr.f32.mxu0 0.0
    %1731 = vmatmul.mubr.f32.gmra.mrb[0].mxu0 %v105
    %v1732 = vpop.f32.mrb[0].mxu0
    %v1733 = vadd.f32 0.0, %v1732
    %v1734 = vpop.f32.mrb[0].mxu0
    %1735 = vmatprep.mubr.f32.mxu0 0.0
    %1736 = vmatmul.mubr.f32.gmra.mrb[0].mxu0 %v106
    %v1737 = vpop.f32.mrb[0].mxu0
    %v1738 = vadd.f32 0.0, %v1737
    %v1739 = vpop.f32.mrb[0].mxu0
    %1740 = vmatprep.mubr.f32.mxu0 0.0
    %1741 = vmatmul.mubr.f32.gmra.mrb[0].mxu0 %v107
    %v1742 = vpop.f32.mrb[0].mxu0
    %v1743 = vadd.f32 0.0, %v1742
    %v1744 = vpop.f32.mrb[0].mxu0
    %1745 = vmatprep.mubr.f32.mxu0 0.0
    %1746 = vmatmul.mubr.f32.gmra.mrb[0].mxu0 %v108
    %v1747 = vpop.f32.mrb[0].mxu0
    %v1748 = vadd.f32 0.0, %v1747
    %v1749 = vpop.f32.mrb[0].mxu0
    %1750 = vmatprep.mubr.f32.mxu0 0.0
    %1751 = vmatmul.mubr.f32.gmra.mrb[0].mxu0 %v109
    %v1752 = vpop.f32.mrb[0].mxu0
    %v1753 = vadd.f32 0.0, %v1752
    %v1754 = vpop.f32.mrb[0].mxu0
    %1755 = vmatprep.mubr.f32.mxu0 0.0
    %1756 = vmatmul.mubr.f32.gmra.mrb[0].mxu0 %v110
    %v1757 = vpop.f32.mrb[0].mxu0
    %v1758 = vadd.f32 0.0, %v1757
    %v1759 = vpop.f32.mrb[0].mxu0
    %1760 = vmatprep.mubr.f32.mxu0 0.0
    %1761 = vmatmul.mubr.f32.gmra.mrb[0].mxu0 %v111
    %v1762 = vpop.f32.mrb[0].mxu0
    %v1763 = vadd.f32 0.0, %v1762
    %v1764 = vpop.f32.mrb[0].mxu0
    %1765 = vmatprep.mubr.f32.mxu0 0.0
    %1766 = vmatmul.mubr.f32.gmra.mrb[0].mxu0 %v112
    %v1767 = vpop.f32.mrb[0].mxu0
    %v1768 = vadd.f32 0.0, %v1767
    %v1769 = vpop.f32.mrb[0].mxu0
    %1770 = vmatprep.mubr.f32.mxu0 0.0
    %1771 = vmatmul.mubr.f32.gmra.mrb[0].mxu0 %v113
    %v1772 = vpop.f32.mrb[0].mxu0
    %v1773 = vadd.f32 0.0, %v1772
    %v1774 = vpop.f32.mrb[0].mxu0
    %1775 = vmatprep.mubr.f32.mxu0 0.0
    %1776 = vmatmul.mubr.f32.gmra.mrb[0].mxu0 %v114
    %v1777 = vpop.f32.mrb[0].mxu0
    %v1778 = vadd.f32 0.0, %v1777
    %v1779 = vpop.f32.mrb[0].mxu0
    %1780 = vmatprep.mubr.f32.mxu0 0.0
    %1781 = vmatmul.mubr.f32.gmra.mrb[0].mxu0 %v115
    %v1782 = vpop.f32.mrb[0].mxu0
    %v1783 = vadd.f32 0.0, %v1782
    %v1784 = vpop.f32.mrb[0].mxu0
    %1785 = vmatprep.mubr.f32.mxu0 0.0
    %1786 = vmatmul.mubr.f32.gmra.mrb[0].mxu0 %v116
    %v1787 = vpop.f32.mrb[0].mxu0
    %v1788 = vadd.f32 0.0, %v1787
    %v1789 = vpop.f32.mrb[0].mxu0
    %1790 = vmatprep.mubr.f32.mxu0 0.0
    %1791 = vmatmul.mubr.f32.gmra.mrb[0].mxu0 %v117
    %v1792 = vpop.f32.mrb[0].mxu0
    %v1793 = vadd.f32 0.0, %v1792
    %v1794 = vpop.f32.mrb[0].mxu0
    %1795 = vmatprep.mubr.f32.mxu0 0.0
    %1796 = vmatmul.mubr.f32.gmra.mrb[0].mxu0 %v118
    %v1797 = vpop.f32.mrb[0].mxu0
    %v1798 = vadd.f32 0.0, %v1797
    %v1799 = vpop.f32.mrb[0].mxu0
    %1800 = vmatprep.mubr.f32.mxu0 0.0
    %1801 = vmatmul.mubr.f32.gmra.mrb[0].mxu0 %v119
    %v1802 = vpop.f32.mrb[0].mxu0
    %v1803 = vadd.f32 0.0, %v1802
    %v1804 = vpop.f32.mrb[0].mxu0
    %1805 = vmatprep.mubr.f32.mxu0 0.0
    %1806 = vmatmul.mubr.f32.gmra.mrb[0].mxu0 %v120
    %v1807 = vpop.f32.mrb[0].mxu0
    %v1808 = vadd.f32 0.0, %v1807
    %v1809 = vpop.f32.mrb[0].mxu0
    %1810 = vdwg.mxu0
    %v1811 = vmax.f32 %v1733, 0.0
    %v1812 = vmax.f32 %v1738, 0.0
    %v1813 = vmax.f32 %v1743, 0.0
    %v1814 = vmax.f32 %v1748, 0.0
    %v1815 = vmax.f32 %v1753, 0.0
    %v1816 = vmax.f32 %v1758, 0.0
    %v1817 = vmax.f32 %v1763, 0.0
    %v1818 = vmax.f32 %v1768, 0.0
    %v1819 = vmax.f32 %v1773, 0.0
    %v1820 = vmax.f32 %v1778, 0.0
    %v1821 = vmax.f32 %v1783, 0.0
    %v1822 = vmax.f32 %v1788, 0.0
    %v1823 = vmax.f32 %v1793, 0.0
    %v1824 = vmax.f32 %v1798, 0.0
    %v1825 = vmax.f32 %v1803, 0.0
    %v1826 = vmax.f32 %v1808, 0.0
    %1827 = vst [vmem:[#allocation11] sm:$0xff] %v1811
    %1828 = vst [vmem:[#allocation11 + $0x8] sm:$0xff] %v1812
    %1829 = vst [vmem:[#allocation11 + $0x10] sm:$0xff] %v1813
    %1830 = vst [vmem:[#allocation11 + $0x18] sm:$0xff] %v1814
    %1831 = vst [vmem:[#allocation11 + $0x20] sm:$0xff] %v1815
    %1832 = vst [vmem:[#allocation11 + $0x28] sm:$0xff] %v1816
    %1833 = vst [vmem:[#allocation11 + $0x30] sm:$0xff] %v1817
    %1834 = vst [vmem:[#allocation11 + $0x38] sm:$0xff] %v1818
    %1835 = vst [vmem:[#allocation11 + $0x40] sm:$0xff] %v1819
    %1836 = vst [vmem:[#allocation11 + $0x48] sm:$0xff] %v1820
    %1837 = vst [vmem:[#allocation11 + $0x50] sm:$0xff] %v1821
    %1838 = vst [vmem:[#allocation11 + $0x58] sm:$0xff] %v1822
    %1839 = vst [vmem:[#allocation11 + $0x60] sm:$0xff] %v1823
    %1840 = vst [vmem:[#allocation11 + $0x68] sm:$0xff] %v1824
    %1841 = vst [vmem:[#allocation11 + $0x70] sm:$0xff] %v1825
    %1842 = vst [vmem:[#allocation11 + $0x78] sm:$0xff] %v1826
    // Predicated region
    $region42: #{tpu_custom_call.1} parent=1 // pred_check
      _
    $region43: #{tpu_custom_call.1} parent=1 // pred_check_branch
      %1844 = sbr.rel (0) target = $region45
    $region44: #{tpu_custom_call.1} parent=1 // pred_region
      %s1846 = ssub.s32 2048, 2048
      %1847 = vsyncadd [#allocation4], %s1846
      %s1848 = sshll.u32 [#allocation11], 4
      %s1849 = int_to_ptr.vmem [resolvable:$true] %s1848
      %1854 = dma.vmem_to_hbm [thread:$0]  %s1849, 2048, %s5, [#allocation4], 128, 128, 8
    $region45: #{tpu_custom_call.1} parent=1 // pred_fallthru
      _
    // Predicated region
    $region46: #{tpu_custom_call.1} parent=1 // pred_check
      _
    $region47: #{tpu_custom_call.1} parent=1 // pred_check_branch
      %1856 = sbr.rel (0) target = $region49
    $region48: #{tpu_custom_call.1} parent=1 // pred_region
      %1857 = dma.done [#allocation4], 2048
    $region49: #{tpu_custom_call.1} parent=1 // pred_fallthru
      _
    %1858 = vsyncpa [#allocation3], 1
    %1859 = vsyncpa [#allocation6], 1
    %1860 = vsyncpa [#allocation9], 1
    %1861 = vsyncpa [#allocation4], 1

</llo_original>
